<compile_context>
chip_gen: v5e
topology: v5e:2x2
jax: 0.10.0
libtpu: 0.0.40
codegen_flags: <defaults>
</compile_context>

<pallas_src>
import jax
import jax.numpy as jnp
from jax.experimental import pallas as pl
from jax.experimental.pallas import tpu as pltpu

# ----------------------------- configuration -------------------------------
B, C, H, W = 2, 4, 16, 16          # image batch (nn.Module NCHW input)
T = 8                              # number of diffusion time steps
HID = 32                           # hidden width of the synthetic noise model
N_PIX = B * H * W                  # 512 pixels -> lane axis (multiple of 128)


# --------------------------- fused Pallas kernel ----------------------------
def fused_ddpm_kernel(coef_ref, x_ref, noise_ref, w1t_ref, bias1_ref,
                      w2t_ref, b2_ref, o_ref):
    """Entire DDPMSampler.forward (accelerate=True) in one kernel.

    coef_ref  (SMEM, (T, 3)) : per-step [c_xt, c_eps, sigma]
    x_ref     (VMEM, (C, N)) : x_T, channels on sublanes, pixels on lanes
    noise_ref (VMEM, (T,C,N)): per-step gaussian noise (row 0 is zeros)
    w1t_ref   (VMEM, (HID,C)), w2t_ref (VMEM, (C,HID)): transposed MLP weights
    bias1_ref (VMEM, (T,HID,1)): hoisted (b1 + time_emb[i]) per step
    b2_ref    (VMEM, (C, 1))
    o_ref     (VMEM, (C, N)) : x_0.clip(-1,1)*0.5+0.5
    """
    w1t = w1t_ref[...]                                  # (HID, C)
    w2t = w2t_ref[...]                                  # (C, HID)
    b2 = b2_ref[...]                                    # (C, 1)
    x = x_ref[...]                                      # (C, N) f32

    # for i in reversed(range(T)): x_t = p_sample(x_t, i)   (static unroll)
    for step in range(T):
        i = T - 1 - step                                # reversed time index

        # --- self.model(x_t, t): per-pixel MLP with additive time embedding
        h = jnp.dot(w1t, x, preferred_element_type=jnp.float32)   # (HID, N)
        h = jnp.tanh(h + bias1_ref[i])                             # + (HID,1)
        pred_noise = jnp.dot(w2t, h,
                             preferred_element_type=jnp.float32) + b2  # (C, N)

        # --- predict_xt_prev_mean_from_noise + sigma * noise
        c_xt = coef_ref[i, 0]
        c_eps = coef_ref[i, 1]
        sigma = coef_ref[i, 2]
        x = c_xt * x - c_eps * pred_noise + sigma * noise_ref[i]

    # x_0.clip(-1, 1) * 0.5 + 0.5
    o_ref[...] = jnp.clip(x, -1.0, 1.0) * 0.5 + 0.5


# ------------------------------ wrappers ------------------------------------
def make_schedule(t_steps):
    """Mirrors GaussianDiffusionBase / DDPMSampler(accelerate=True) buffers."""
    betas = jnp.linspace(1e-4, 0.02, t_steps, dtype=jnp.float32)
    alphas = 1.0 - betas
    alphas_cumprod = jnp.cumprod(alphas)
    alphas_cumprod_prev = jnp.concatenate(
        [jnp.ones((1,), jnp.float32), alphas_cumprod[:-1]])
    variance = (1.0 - alphas) * (1.0 - alphas_cumprod_prev) / (1.0 - alphas_cumprod)
    sigma = jnp.sqrt(variance)                                   # sigma[0] == 0
    posterior_mean_coeff_xt = jnp.sqrt(1.0 / alphas)
    posterior_mean_coeff_eps = (1.0 - alphas) / (
        jnp.sqrt(1.0 - alphas_cumprod) * jnp.sqrt(alphas))
    # coefs[i] = [c_xt, c_eps, sigma] for step i
    return jnp.stack(
        [posterior_mean_coeff_xt, posterior_mean_coeff_eps, sigma], axis=1)


def ddpm_sampler_forward(x_t_nchw, params, coefs, noise_key):
    """DDPMSampler.forward (accelerate=True); one fused Pallas call."""
    w1, b1, w2, b2, time_emb = params

    # NCHW -> (C, B*H*W): pixels on the lane axis.
    x_cn = jnp.transpose(x_t_nchw, (1, 0, 2, 3)).reshape(C, N_PIX)

    # Layout plumbing done once in the wrapper.
    w1t = jnp.transpose(w1)                       # (HID, C)
    w2t = jnp.transpose(w2)                       # (C, HID)
    b2_col = b2.reshape(C, 1)                     # (C, 1)
    bias1 = (b1 + time_emb).reshape(T, HID, 1)    # hoisted b1 + temb[i]

    # One (T, C, N) noise tensor; step 0 uses noise = 0.0 (as in the module).
    noise = jax.random.normal(noise_key, (T, C, N_PIX), dtype=jnp.float32)
    noise = noise.at[0].set(0.0)

    out_cn = pl.pallas_call(
        fused_ddpm_kernel,
        out_shape=jax.ShapeDtypeStruct((C, N_PIX), jnp.float32),
        in_specs=[
            pl.BlockSpec(memory_space=pltpu.MemorySpace.SMEM),   # coefs (T,3)
            pl.BlockSpec(memory_space=pltpu.MemorySpace.VMEM),   # x     (C,N)
            pl.BlockSpec(memory_space=pltpu.MemorySpace.VMEM),   # noise (T,C,N)
            pl.BlockSpec(memory_space=pltpu.MemorySpace.VMEM),   # w1t
            pl.BlockSpec(memory_space=pltpu.MemorySpace.VMEM),   # bias1
            pl.BlockSpec(memory_space=pltpu.MemorySpace.VMEM),   # w2t
            pl.BlockSpec(memory_space=pltpu.MemorySpace.VMEM),   # b2
        ],
        out_specs=pl.BlockSpec(memory_space=pltpu.MemorySpace.VMEM),
    )(coefs, x_cn, noise, w1t, bias1, w2t, b2_col)

    # (C, B*H*W) -> NCHW
    return jnp.transpose(out_cn.reshape(C, B, H, W), (1, 0, 2, 3))


# ------------------------------- main ----------------------------------------
if __name__ == "__main__":
    key = jax.random.PRNGKey(0)
    k_x, k_w1, k_w2, k_emb, k_noise = jax.random.split(key, 5)

    # deterministic synthetic noise-prediction model parameters
    # TODO(synk): the original `model` is an arbitrary nn.Module (e.g. a UNet);
    # here it is a deterministic per-pixel MLP conditioned on a time embedding.
    w1 = jax.random.normal(k_w1, (C, HID), dtype=jnp.float32) * 0.1
    b1 = jnp.zeros((1, HID), dtype=jnp.float32)
    w2 = jax.random.normal(k_w2, (HID, C), dtype=jnp.float32) * 0.1
    b2 = jnp.zeros((1, C), dtype=jnp.float32)
    time_emb = jax.random.normal(k_emb, (T, HID), dtype=jnp.float32) * 0.1
    params = (w1, b1, w2, b2, time_emb)

    coefs = make_schedule(T)                    # (T, 3)

    # example noisy input x_t, NCHW like the PyTorch module expects
    x_t = jax.random.normal(k_x, (B, C, H, W), dtype=jnp.float32)

    fwd = jax.jit(lambda x, k: ddpm_sampler_forward(x, params, coefs, k))
    x_0 = fwd(x_t, k_noise)
    x_0 = jax.block_until_ready(x_0)

    assert x_0.shape == (B, C, H, W)
    assert x_0.dtype == jnp.float32
    assert bool(jnp.all(jnp.isfinite(x_0)))
    assert bool(jnp.all(x_0 >= 0.0)) and bool(jnp.all(x_0 <= 1.0))
    print("KERNEL_OK")
</pallas_src>

<mosaic_0001>
module attributes {stable_mosaic.version = 11 : i64} {
  func.func @fused_ddpm_kernel(%arg0: memref<8x3xf32, #tpu.memory_space<smem>>, %arg1: memref<4x512xf32, #tpu.memory_space<vmem>>, %arg2: memref<8x4x512xf32, #tpu.memory_space<vmem>>, %arg3: memref<32x4xf32, #tpu.memory_space<vmem>>, %arg4: memref<8x32x1xf32, #tpu.memory_space<vmem>>, %arg5: memref<4x32xf32, #tpu.memory_space<vmem>>, %arg6: memref<4x1xf32, #tpu.memory_space<vmem>>, %arg7: memref<4x512xf32, #tpu.memory_space<vmem>>) attributes {dimension_semantics = [], scalar_prefetch = 0 : i64, scratch_operands = 0 : i64, tpu.core_type = #tpu.core_type<tc>} {
    %c0 = arith.constant 0 : index
    %c0_0 = arith.constant 0 : index
    %0 = vector.load %arg3[%c0, %c0_0] : memref<32x4xf32, #tpu.memory_space<vmem>>, vector<32x4xf32>
    %c0_1 = arith.constant 0 : index
    %c0_2 = arith.constant 0 : index
    %1 = vector.load %arg5[%c0_1, %c0_2] : memref<4x32xf32, #tpu.memory_space<vmem>>, vector<4x32xf32>
    %c0_3 = arith.constant 0 : index
    %c0_4 = arith.constant 0 : index
    %2 = vector.load %arg6[%c0_3, %c0_4] : memref<4x1xf32, #tpu.memory_space<vmem>>, vector<4x1xf32>
    %c0_5 = arith.constant 0 : index
    %c0_6 = arith.constant 0 : index
    %3 = vector.load %arg1[%c0_5, %c0_6] : memref<4x512xf32, #tpu.memory_space<vmem>>, vector<4x512xf32>
    %cst = arith.constant dense<0.000000e+00> : vector<32x512xf32>
    %4 = tpu.matmul %0, %3, %cst {dimension_numbers = #tpu.dot_dimension_numbers<[1], [0], [0], [1], [0, 0, 1, 1], [], []>} : vector<32x4xf32>, vector<4x512xf32>, vector<32x512xf32> -> vector<32x512xf32>
    %c7 = arith.constant 7 : index
    %c0_7 = arith.constant 0 : index
    %c0_8 = arith.constant 0 : index
    %5 = vector.load %arg4[%c7, %c0_7, %c0_8] : memref<8x32x1xf32, #tpu.memory_space<vmem>>, vector<1x32x1xf32>
    %6 = vector.shape_cast %5 : vector<1x32x1xf32> to vector<32x1xf32>
    %7 = vector.broadcast %6 : vector<32x1xf32> to vector<32x512xf32>
    %8 = arith.addf %4, %7 : vector<32x512xf32>
    %9 = math.tanh %8 : vector<32x512xf32>
    %cst_9 = arith.constant dense<0.000000e+00> : vector<4x512xf32>
    %10 = tpu.matmul %1, %9, %cst_9 {dimension_numbers = #tpu.dot_dimension_numbers<[1], [0], [0], [1], [0, 0, 1, 1], [], []>} : vector<4x32xf32>, vector<32x512xf32>, vector<4x512xf32> -> vector<4x512xf32>
    %11 = vector.broadcast %2 : vector<4x1xf32> to vector<4x512xf32>
    %12 = arith.addf %10, %11 : vector<4x512xf32>
    %c7_10 = arith.constant 7 : index
    %c0_11 = arith.constant 0 : index
    %13 = memref.load %arg0[%c7_10, %c0_11] : memref<8x3xf32, #tpu.memory_space<smem>>
    %c7_12 = arith.constant 7 : index
    %c1 = arith.constant 1 : index
    %14 = memref.load %arg0[%c7_12, %c1] : memref<8x3xf32, #tpu.memory_space<smem>>
    %c7_13 = arith.constant 7 : index
    %c2 = arith.constant 2 : index
    %15 = memref.load %arg0[%c7_13, %c2] : memref<8x3xf32, #tpu.memory_space<smem>>
    %16 = vector.broadcast %13 : f32 to vector<4x512xf32>
    %17 = arith.mulf %16, %3 : vector<4x512xf32>
    %18 = vector.broadcast %14 : f32 to vector<4x512xf32>
    %19 = arith.mulf %18, %12 : vector<4x512xf32>
    %20 = arith.subf %17, %19 : vector<4x512xf32>
    %c7_14 = arith.constant 7 : index
    %c0_15 = arith.constant 0 : index
    %c0_16 = arith.constant 0 : index
    %21 = vector.load %arg2[%c7_14, %c0_15, %c0_16] : memref<8x4x512xf32, #tpu.memory_space<vmem>>, vector<1x4x512xf32>
    %22 = vector.shape_cast %21 : vector<1x4x512xf32> to vector<4x512xf32>
    %23 = vector.broadcast %15 : f32 to vector<4x512xf32>
    %24 = arith.mulf %23, %22 : vector<4x512xf32>
    %25 = arith.addf %20, %24 : vector<4x512xf32>
    %cst_17 = arith.constant dense<0.000000e+00> : vector<32x512xf32>
    %26 = tpu.matmul %0, %25, %cst_17 {dimension_numbers = #tpu.dot_dimension_numbers<[1], [0], [0], [1], [0, 0, 1, 1], [], []>} : vector<32x4xf32>, vector<4x512xf32>, vector<32x512xf32> -> vector<32x512xf32>
    %c6 = arith.constant 6 : index
    %c0_18 = arith.constant 0 : index
    %c0_19 = arith.constant 0 : index
    %27 = vector.load %arg4[%c6, %c0_18, %c0_19] : memref<8x32x1xf32, #tpu.memory_space<vmem>>, vector<1x32x1xf32>
    %28 = vector.shape_cast %27 : vector<1x32x1xf32> to vector<32x1xf32>
    %29 = vector.broadcast %28 : vector<32x1xf32> to vector<32x512xf32>
    %30 = arith.addf %26, %29 : vector<32x512xf32>
    %31 = math.tanh %30 : vector<32x512xf32>
    %cst_20 = arith.constant dense<0.000000e+00> : vector<4x512xf32>
    %32 = tpu.matmul %1, %31, %cst_20 {dimension_numbers = #tpu.dot_dimension_numbers<[1], [0], [0], [1], [0, 0, 1, 1], [], []>} : vector<4x32xf32>, vector<32x512xf32>, vector<4x512xf32> -> vector<4x512xf32>
    %33 = vector.broadcast %2 : vector<4x1xf32> to vector<4x512xf32>
    %34 = arith.addf %32, %33 : vector<4x512xf32>
    %c6_21 = arith.constant 6 : index
    %c0_22 = arith.constant 0 : index
    %35 = memref.load %arg0[%c6_21, %c0_22] : memref<8x3xf32, #tpu.memory_space<smem>>
    %c6_23 = arith.constant 6 : index
    %c1_24 = arith.constant 1 : index
    %36 = memref.load %arg0[%c6_23, %c1_24] : memref<8x3xf32, #tpu.memory_space<smem>>
    %c6_25 = arith.constant 6 : index
    %c2_26 = arith.constant 2 : index
    %37 = memref.load %arg0[%c6_25, %c2_26] : memref<8x3xf32, #tpu.memory_space<smem>>
    %38 = vector.broadcast %35 : f32 to vector<4x512xf32>
    %39 = arith.mulf %38, %25 : vector<4x512xf32>
    %40 = vector.broadcast %36 : f32 to vector<4x512xf32>
    %41 = arith.mulf %40, %34 : vector<4x512xf32>
    %42 = arith.subf %39, %41 : vector<4x512xf32>
    %c6_27 = arith.constant 6 : index
    %c0_28 = arith.constant 0 : index
    %c0_29 = arith.constant 0 : index
    %43 = vector.load %arg2[%c6_27, %c0_28, %c0_29] : memref<8x4x512xf32, #tpu.memory_space<vmem>>, vector<1x4x512xf32>
    %44 = vector.shape_cast %43 : vector<1x4x512xf32> to vector<4x512xf32>
    %45 = vector.broadcast %37 : f32 to vector<4x512xf32>
    %46 = arith.mulf %45, %44 : vector<4x512xf32>
    %47 = arith.addf %42, %46 : vector<4x512xf32>
    %cst_30 = arith.constant dense<0.000000e+00> : vector<32x512xf32>
    %48 = tpu.matmul %0, %47, %cst_30 {dimension_numbers = #tpu.dot_dimension_numbers<[1], [0], [0], [1], [0, 0, 1, 1], [], []>} : vector<32x4xf32>, vector<4x512xf32>, vector<32x512xf32> -> vector<32x512xf32>
    %c5 = arith.constant 5 : index
    %c0_31 = arith.constant 0 : index
    %c0_32 = arith.constant 0 : index
    %49 = vector.load %arg4[%c5, %c0_31, %c0_32] : memref<8x32x1xf32, #tpu.memory_space<vmem>>, vector<1x32x1xf32>
    %50 = vector.shape_cast %49 : vector<1x32x1xf32> to vector<32x1xf32>
    %51 = vector.broadcast %50 : vector<32x1xf32> to vector<32x512xf32>
    %52 = arith.addf %48, %51 : vector<32x512xf32>
    %53 = math.tanh %52 : vector<32x512xf32>
    %cst_33 = arith.constant dense<0.000000e+00> : vector<4x512xf32>
    %54 = tpu.matmul %1, %53, %cst_33 {dimension_numbers = #tpu.dot_dimension_numbers<[1], [0], [0], [1], [0, 0, 1, 1], [], []>} : vector<4x32xf32>, vector<32x512xf32>, vector<4x512xf32> -> vector<4x512xf32>
    %55 = vector.broadcast %2 : vector<4x1xf32> to vector<4x512xf32>
    %56 = arith.addf %54, %55 : vector<4x512xf32>
    %c5_34 = arith.constant 5 : index
    %c0_35 = arith.constant 0 : index
    %57 = memref.load %arg0[%c5_34, %c0_35] : memref<8x3xf32, #tpu.memory_space<smem>>
    %c5_36 = arith.constant 5 : index
    %c1_37 = arith.constant 1 : index
    %58 = memref.load %arg0[%c5_36, %c1_37] : memref<8x3xf32, #tpu.memory_space<smem>>
    %c5_38 = arith.constant 5 : index
    %c2_39 = arith.constant 2 : index
    %59 = memref.load %arg0[%c5_38, %c2_39] : memref<8x3xf32, #tpu.memory_space<smem>>
    %60 = vector.broadcast %57 : f32 to vector<4x512xf32>
    %61 = arith.mulf %60, %47 : vector<4x512xf32>
    %62 = vector.broadcast %58 : f32 to vector<4x512xf32>
    %63 = arith.mulf %62, %56 : vector<4x512xf32>
    %64 = arith.subf %61, %63 : vector<4x512xf32>
    %c5_40 = arith.constant 5 : index
    %c0_41 = arith.constant 0 : index
    %c0_42 = arith.constant 0 : index
    %65 = vector.load %arg2[%c5_40, %c0_41, %c0_42] : memref<8x4x512xf32, #tpu.memory_space<vmem>>, vector<1x4x512xf32>
    %66 = vector.shape_cast %65 : vector<1x4x512xf32> to vector<4x512xf32>
    %67 = vector.broadcast %59 : f32 to vector<4x512xf32>
    %68 = arith.mulf %67, %66 : vector<4x512xf32>
    %69 = arith.addf %64, %68 : vector<4x512xf32>
    %cst_43 = arith.constant dense<0.000000e+00> : vector<32x512xf32>
    %70 = tpu.matmul %0, %69, %cst_43 {dimension_numbers = #tpu.dot_dimension_numbers<[1], [0], [0], [1], [0, 0, 1, 1], [], []>} : vector<32x4xf32>, vector<4x512xf32>, vector<32x512xf32> -> vector<32x512xf32>
    %c4 = arith.constant 4 : index
    %c0_44 = arith.constant 0 : index
    %c0_45 = arith.constant 0 : index
    %71 = vector.load %arg4[%c4, %c0_44, %c0_45] : memref<8x32x1xf32, #tpu.memory_space<vmem>>, vector<1x32x1xf32>
    %72 = vector.shape_cast %71 : vector<1x32x1xf32> to vector<32x1xf32>
    %73 = vector.broadcast %72 : vector<32x1xf32> to vector<32x512xf32>
    %74 = arith.addf %70, %73 : vector<32x512xf32>
    %75 = math.tanh %74 : vector<32x512xf32>
    %cst_46 = arith.constant dense<0.000000e+00> : vector<4x512xf32>
    %76 = tpu.matmul %1, %75, %cst_46 {dimension_numbers = #tpu.dot_dimension_numbers<[1], [0], [0], [1], [0, 0, 1, 1], [], []>} : vector<4x32xf32>, vector<32x512xf32>, vector<4x512xf32> -> vector<4x512xf32>
    %77 = vector.broadcast %2 : vector<4x1xf32> to vector<4x512xf32>
    %78 = arith.addf %76, %77 : vector<4x512xf32>
    %c4_47 = arith.constant 4 : index
    %c0_48 = arith.constant 0 : index
    %79 = memref.load %arg0[%c4_47, %c0_48] : memref<8x3xf32, #tpu.memory_space<smem>>
    %c4_49 = arith.constant 4 : index
    %c1_50 = arith.constant 1 : index
    %80 = memref.load %arg0[%c4_49, %c1_50] : memref<8x3xf32, #tpu.memory_space<smem>>
    %c4_51 = arith.constant 4 : index
    %c2_52 = arith.constant 2 : index
    %81 = memref.load %arg0[%c4_51, %c2_52] : memref<8x3xf32, #tpu.memory_space<smem>>
    %82 = vector.broadcast %79 : f32 to vector<4x512xf32>
    %83 = arith.mulf %82, %69 : vector<4x512xf32>
    %84 = vector.broadcast %80 : f32 to vector<4x512xf32>
    %85 = arith.mulf %84, %78 : vector<4x512xf32>
    %86 = arith.subf %83, %85 : vector<4x512xf32>
    %c4_53 = arith.constant 4 : index
    %c0_54 = arith.constant 0 : index
    %c0_55 = arith.constant 0 : index
    %87 = vector.load %arg2[%c4_53, %c0_54, %c0_55] : memref<8x4x512xf32, #tpu.memory_space<vmem>>, vector<1x4x512xf32>
    %88 = vector.shape_cast %87 : vector<1x4x512xf32> to vector<4x512xf32>
    %89 = vector.broadcast %81 : f32 to vector<4x512xf32>
    %90 = arith.mulf %89, %88 : vector<4x512xf32>
    %91 = arith.addf %86, %90 : vector<4x512xf32>
    %cst_56 = arith.constant dense<0.000000e+00> : vector<32x512xf32>
    %92 = tpu.matmul %0, %91, %cst_56 {dimension_numbers = #tpu.dot_dimension_numbers<[1], [0], [0], [1], [0, 0, 1, 1], [], []>} : vector<32x4xf32>, vector<4x512xf32>, vector<32x512xf32> -> vector<32x512xf32>
    %c3 = arith.constant 3 : index
    %c0_57 = arith.constant 0 : index
    %c0_58 = arith.constant 0 : index
    %93 = vector.load %arg4[%c3, %c0_57, %c0_58] : memref<8x32x1xf32, #tpu.memory_space<vmem>>, vector<1x32x1xf32>
    %94 = vector.shape_cast %93 : vector<1x32x1xf32> to vector<32x1xf32>
    %95 = vector.broadcast %94 : vector<32x1xf32> to vector<32x512xf32>
    %96 = arith.addf %92, %95 : vector<32x512xf32>
    %97 = math.tanh %96 : vector<32x512xf32>
    %cst_59 = arith.constant dense<0.000000e+00> : vector<4x512xf32>
    %98 = tpu.matmul %1, %97, %cst_59 {dimension_numbers = #tpu.dot_dimension_numbers<[1], [0], [0], [1], [0, 0, 1, 1], [], []>} : vector<4x32xf32>, vector<32x512xf32>, vector<4x512xf32> -> vector<4x512xf32>
    %99 = vector.broadcast %2 : vector<4x1xf32> to vector<4x512xf32>
    %100 = arith.addf %98, %99 : vector<4x512xf32>
    %c3_60 = arith.constant 3 : index
    %c0_61 = arith.constant 0 : index
    %101 = memref.load %arg0[%c3_60, %c0_61] : memref<8x3xf32, #tpu.memory_space<smem>>
    %c3_62 = arith.constant 3 : index
    %c1_63 = arith.constant 1 : index
    %102 = memref.load %arg0[%c3_62, %c1_63] : memref<8x3xf32, #tpu.memory_space<smem>>
    %c3_64 = arith.constant 3 : index
    %c2_65 = arith.constant 2 : index
    %103 = memref.load %arg0[%c3_64, %c2_65] : memref<8x3xf32, #tpu.memory_space<smem>>
    %104 = vector.broadcast %101 : f32 to vector<4x512xf32>
    %105 = arith.mulf %104, %91 : vector<4x512xf32>
    %106 = vector.broadcast %102 : f32 to vector<4x512xf32>
    %107 = arith.mulf %106, %100 : vector<4x512xf32>
    %108 = arith.subf %105, %107 : vector<4x512xf32>
    %c3_66 = arith.constant 3 : index
    %c0_67 = arith.constant 0 : index
    %c0_68 = arith.constant 0 : index
    %109 = vector.load %arg2[%c3_66, %c0_67, %c0_68] : memref<8x4x512xf32, #tpu.memory_space<vmem>>, vector<1x4x512xf32>
    %110 = vector.shape_cast %109 : vector<1x4x512xf32> to vector<4x512xf32>
    %111 = vector.broadcast %103 : f32 to vector<4x512xf32>
    %112 = arith.mulf %111, %110 : vector<4x512xf32>
    %113 = arith.addf %108, %112 : vector<4x512xf32>
    %cst_69 = arith.constant dense<0.000000e+00> : vector<32x512xf32>
    %114 = tpu.matmul %0, %113, %cst_69 {dimension_numbers = #tpu.dot_dimension_numbers<[1], [0], [0], [1], [0, 0, 1, 1], [], []>} : vector<32x4xf32>, vector<4x512xf32>, vector<32x512xf32> -> vector<32x512xf32>
    %c2_70 = arith.constant 2 : index
    %c0_71 = arith.constant 0 : index
    %c0_72 = arith.constant 0 : index
    %115 = vector.load %arg4[%c2_70, %c0_71, %c0_72] : memref<8x32x1xf32, #tpu.memory_space<vmem>>, vector<1x32x1xf32>
    %116 = vector.shape_cast %115 : vector<1x32x1xf32> to vector<32x1xf32>
    %117 = vector.broadcast %116 : vector<32x1xf32> to vector<32x512xf32>
    %118 = arith.addf %114, %117 : vector<32x512xf32>
    %119 = math.tanh %118 : vector<32x512xf32>
    %cst_73 = arith.constant dense<0.000000e+00> : vector<4x512xf32>
    %120 = tpu.matmul %1, %119, %cst_73 {dimension_numbers = #tpu.dot_dimension_numbers<[1], [0], [0], [1], [0, 0, 1, 1], [], []>} : vector<4x32xf32>, vector<32x512xf32>, vector<4x512xf32> -> vector<4x512xf32>
    %121 = vector.broadcast %2 : vector<4x1xf32> to vector<4x512xf32>
    %122 = arith.addf %120, %121 : vector<4x512xf32>
    %c2_74 = arith.constant 2 : index
    %c0_75 = arith.constant 0 : index
    %123 = memref.load %arg0[%c2_74, %c0_75] : memref<8x3xf32, #tpu.memory_space<smem>>
    %c2_76 = arith.constant 2 : index
    %c1_77 = arith.constant 1 : index
    %124 = memref.load %arg0[%c2_76, %c1_77] : memref<8x3xf32, #tpu.memory_space<smem>>
    %c2_78 = arith.constant 2 : index
    %c2_79 = arith.constant 2 : index
    %125 = memref.load %arg0[%c2_78, %c2_79] : memref<8x3xf32, #tpu.memory_space<smem>>
    %126 = vector.broadcast %123 : f32 to vector<4x512xf32>
    %127 = arith.mulf %126, %113 : vector<4x512xf32>
    %128 = vector.broadcast %124 : f32 to vector<4x512xf32>
    %129 = arith.mulf %128, %122 : vector<4x512xf32>
    %130 = arith.subf %127, %129 : vector<4x512xf32>
    %c2_80 = arith.constant 2 : index
    %c0_81 = arith.constant 0 : index
    %c0_82 = arith.constant 0 : index
    %131 = vector.load %arg2[%c2_80, %c0_81, %c0_82] : memref<8x4x512xf32, #tpu.memory_space<vmem>>, vector<1x4x512xf32>
    %132 = vector.shape_cast %131 : vector<1x4x512xf32> to vector<4x512xf32>
    %133 = vector.broadcast %125 : f32 to vector<4x512xf32>
    %134 = arith.mulf %133, %132 : vector<4x512xf32>
    %135 = arith.addf %130, %134 : vector<4x512xf32>
    %cst_83 = arith.constant dense<0.000000e+00> : vector<32x512xf32>
    %136 = tpu.matmul %0, %135, %cst_83 {dimension_numbers = #tpu.dot_dimension_numbers<[1], [0], [0], [1], [0, 0, 1, 1], [], []>} : vector<32x4xf32>, vector<4x512xf32>, vector<32x512xf32> -> vector<32x512xf32>
    %c1_84 = arith.constant 1 : index
    %c0_85 = arith.constant 0 : index
    %c0_86 = arith.constant 0 : index
    %137 = vector.load %arg4[%c1_84, %c0_85, %c0_86] : memref<8x32x1xf32, #tpu.memory_space<vmem>>, vector<1x32x1xf32>
    %138 = vector.shape_cast %137 : vector<1x32x1xf32> to vector<32x1xf32>
    %139 = vector.broadcast %138 : vector<32x1xf32> to vector<32x512xf32>
    %140 = arith.addf %136, %139 : vector<32x512xf32>
    %141 = math.tanh %140 : vector<32x512xf32>
    %cst_87 = arith.constant dense<0.000000e+00> : vector<4x512xf32>
    %142 = tpu.matmul %1, %141, %cst_87 {dimension_numbers = #tpu.dot_dimension_numbers<[1], [0], [0], [1], [0, 0, 1, 1], [], []>} : vector<4x32xf32>, vector<32x512xf32>, vector<4x512xf32> -> vector<4x512xf32>
    %143 = vector.broadcast %2 : vector<4x1xf32> to vector<4x512xf32>
    %144 = arith.addf %142, %143 : vector<4x512xf32>
    %c1_88 = arith.constant 1 : index
    %c0_89 = arith.constant 0 : index
    %145 = memref.load %arg0[%c1_88, %c0_89] : memref<8x3xf32, #tpu.memory_space<smem>>
    %c1_90 = arith.constant 1 : index
    %c1_91 = arith.constant 1 : index
    %146 = memref.load %arg0[%c1_90, %c1_91] : memref<8x3xf32, #tpu.memory_space<smem>>
    %c1_92 = arith.constant 1 : index
    %c2_93 = arith.constant 2 : index
    %147 = memref.load %arg0[%c1_92, %c2_93] : memref<8x3xf32, #tpu.memory_space<smem>>
    %148 = vector.broadcast %145 : f32 to vector<4x512xf32>
    %149 = arith.mulf %148, %135 : vector<4x512xf32>
    %150 = vector.broadcast %146 : f32 to vector<4x512xf32>
    %151 = arith.mulf %150, %144 : vector<4x512xf32>
    %152 = arith.subf %149, %151 : vector<4x512xf32>
    %c1_94 = arith.constant 1 : index
    %c0_95 = arith.constant 0 : index
    %c0_96 = arith.constant 0 : index
    %153 = vector.load %arg2[%c1_94, %c0_95, %c0_96] : memref<8x4x512xf32, #tpu.memory_space<vmem>>, vector<1x4x512xf32>
    %154 = vector.shape_cast %153 : vector<1x4x512xf32> to vector<4x512xf32>
    %155 = vector.broadcast %147 : f32 to vector<4x512xf32>
    %156 = arith.mulf %155, %154 : vector<4x512xf32>
    %157 = arith.addf %152, %156 : vector<4x512xf32>
    %cst_97 = arith.constant dense<0.000000e+00> : vector<32x512xf32>
    %158 = tpu.matmul %0, %157, %cst_97 {dimension_numbers = #tpu.dot_dimension_numbers<[1], [0], [0], [1], [0, 0, 1, 1], [], []>} : vector<32x4xf32>, vector<4x512xf32>, vector<32x512xf32> -> vector<32x512xf32>
    %c0_98 = arith.constant 0 : index
    %c0_99 = arith.constant 0 : index
    %c0_100 = arith.constant 0 : index
    %159 = vector.load %arg4[%c0_98, %c0_99, %c0_100] : memref<8x32x1xf32, #tpu.memory_space<vmem>>, vector<1x32x1xf32>
    %160 = vector.shape_cast %159 : vector<1x32x1xf32> to vector<32x1xf32>
    %161 = vector.broadcast %160 : vector<32x1xf32> to vector<32x512xf32>
    %162 = arith.addf %158, %161 : vector<32x512xf32>
    %163 = math.tanh %162 : vector<32x512xf32>
    %cst_101 = arith.constant dense<0.000000e+00> : vector<4x512xf32>
    %164 = tpu.matmul %1, %163, %cst_101 {dimension_numbers = #tpu.dot_dimension_numbers<[1], [0], [0], [1], [0, 0, 1, 1], [], []>} : vector<4x32xf32>, vector<32x512xf32>, vector<4x512xf32> -> vector<4x512xf32>
    %165 = vector.broadcast %2 : vector<4x1xf32> to vector<4x512xf32>
    %166 = arith.addf %164, %165 : vector<4x512xf32>
    %c0_102 = arith.constant 0 : index
    %c0_103 = arith.constant 0 : index
    %167 = memref.load %arg0[%c0_102, %c0_103] : memref<8x3xf32, #tpu.memory_space<smem>>
    %c0_104 = arith.constant 0 : index
    %c1_105 = arith.constant 1 : index
    %168 = memref.load %arg0[%c0_104, %c1_105] : memref<8x3xf32, #tpu.memory_space<smem>>
    %c0_106 = arith.constant 0 : index
    %c2_107 = arith.constant 2 : index
    %169 = memref.load %arg0[%c0_106, %c2_107] : memref<8x3xf32, #tpu.memory_space<smem>>
    %170 = vector.broadcast %167 : f32 to vector<4x512xf32>
    %171 = arith.mulf %170, %157 : vector<4x512xf32>
    %172 = vector.broadcast %168 : f32 to vector<4x512xf32>
    %173 = arith.mulf %172, %166 : vector<4x512xf32>
    %174 = arith.subf %171, %173 : vector<4x512xf32>
    %c0_108 = arith.constant 0 : index
    %c0_109 = arith.constant 0 : index
    %c0_110 = arith.constant 0 : index
    %175 = vector.load %arg2[%c0_108, %c0_109, %c0_110] : memref<8x4x512xf32, #tpu.memory_space<vmem>>, vector<1x4x512xf32>
    %176 = vector.shape_cast %175 : vector<1x4x512xf32> to vector<4x512xf32>
    %177 = vector.broadcast %169 : f32 to vector<4x512xf32>
    %178 = arith.mulf %177, %176 : vector<4x512xf32>
    %179 = arith.addf %174, %178 : vector<4x512xf32>
    %cst_111 = arith.constant -1.000000e+00 : f32
    %cst_112 = arith.constant 1.000000e+00 : f32
    %180 = vector.broadcast %cst_111 : f32 to vector<4x512xf32>
    %181 = arith.maximumf %180, %179 : vector<4x512xf32>
    %182 = vector.broadcast %cst_112 : f32 to vector<4x512xf32>
    %183 = arith.minimumf %182, %181 : vector<4x512xf32>
    %cst_113 = arith.constant 5.000000e-01 : f32
    %184 = vector.broadcast %cst_113 : f32 to vector<4x512xf32>
    %185 = arith.mulf %183, %184 : vector<4x512xf32>
    %cst_114 = arith.constant 5.000000e-01 : f32
    %186 = vector.broadcast %cst_114 : f32 to vector<4x512xf32>
    %187 = arith.addf %185, %186 : vector<4x512xf32>
    %c0_115 = arith.constant 0 : index
    %c0_116 = arith.constant 0 : index
    %188 = vector.load %arg7[%c0_115, %c0_116] : memref<4x512xf32, #tpu.memory_space<vmem>>, vector<4x512xf32>
    tpu.vector_store %arg7[%c0_115, %c0_116], %187 {strides = array<i32>} : memref<4x512xf32, #tpu.memory_space<vmem>>, vector<4x512xf32>,
    return
  }
}

</mosaic_0001>

<llo_original>
// kernel: _lambda_.1
$region0: #{_lambda_.1}
  #allocation0 [shape = 'u32[]', space=smem, size = 0x4, offset = 0x4, fixed_abs, tag = 'smem constant byte address 0x4 - core index']
  #allocation1 [shape = 'u32[72,128]{1,0:T(1,128)}', space=vmem, size = 0x9000, scoped, tag = 'internal scratch']
  %s0 = inlined_call_operand.vmem [shape: f32[8,3], index: 0, kind: input, shape index: {}]
  %s1 = inlined_call_operand.vmem [shape: f32[4,512], index: 1, kind: input, shape index: {}]
  %s2 = inlined_call_operand.vmem [shape: f32[8,4,512], index: 2, kind: input, shape index: {}]
  %s3 = inlined_call_operand.vmem [shape: f32[32,4], index: 3, kind: input, shape index: {}]
  %s4 = inlined_call_operand.vmem [shape: f32[8,32,1], index: 4, kind: input, shape index: {}]
  %s5 = inlined_call_operand.vmem [shape: f32[4,32], index: 5, kind: input, shape index: {}]
  %s6 = inlined_call_operand.vmem [shape: f32[4,1], index: 6, kind: input, shape index: {}]
  %s7 = inlined_call_operand.vmem [shape: f32[4,512], index: 7, kind: output, shape index: {}]
  %s8 = sld [smem:[#allocation0]]
  $region42: #{_lambda_.1} parent=0
    _
  %s10 = ssub.s32 1, %s8
  %s11 = scalar_select 0, %s10, %s8
  $region1: #{_lambda_.1} parent=0
    #allocation2 [shape = 'u8[4096]{0}', space=smem, size = 0x1000, scoped, tag = 'input window, operand 0, single buffered']
    #allocation3 [shape = 's32[1]{0}', space=sflag, size = 0x4, scoped, tag = 'scoped memory for _lambda_.1']
    %12 = vsyncpa [#allocation3], 0
    // Predicated region
    $region2: #{_lambda_.1} parent=1 // pred_check
      _
    $region3: #{_lambda_.1} parent=1 // pred_check_branch
      %14 = sbr.rel (0) target = $region5
    $region4: #{_lambda_.1} parent=1 // pred_region
      %16 = vsyncadd [#allocation3], 0
      %s18 = sshll.u32 %s0, 4
      %s19 = int_to_ptr.vmem [resolvable:$true] %s18
      %21 = dma.vmem_to_smem %s19, 128, [#allocation2], [#allocation3]
    $region5: #{_lambda_.1} parent=1 // pred_fallthru
      _
    // Predicated region
    $region6: #{_lambda_.1} parent=1 // pred_check
      _
    $region7: #{_lambda_.1} parent=1 // pred_check_branch
      %23 = sbr.rel (0) target = $region9
    $region8: #{_lambda_.1} parent=1 // pred_region
      _
    $region9: #{_lambda_.1} parent=1 // pred_fallthru
      _
    // Predicated region
    $region10: #{_lambda_.1} parent=1 // pred_check
      _
    $region11: #{_lambda_.1} parent=1 // pred_check_branch
      %25 = sbr.rel (0) target = $region13
    $region12: #{_lambda_.1} parent=1 // pred_region
      _
    $region13: #{_lambda_.1} parent=1 // pred_fallthru
      _
    // Predicated region
    $region14: #{_lambda_.1} parent=1 // pred_check
      _
    $region15: #{_lambda_.1} parent=1 // pred_check_branch
      %27 = sbr.rel (0) target = $region17
    $region16: #{_lambda_.1} parent=1 // pred_region
      _
    $region17: #{_lambda_.1} parent=1 // pred_fallthru
      _
    // Predicated region
    $region18: #{_lambda_.1} parent=1 // pred_check
      _
    $region19: #{_lambda_.1} parent=1 // pred_check_branch
      %29 = sbr.rel (0) target = $region21
    $region20: #{_lambda_.1} parent=1 // pred_region
      _
    $region21: #{_lambda_.1} parent=1 // pred_fallthru
      _
    // Predicated region
    $region22: #{_lambda_.1} parent=1 // pred_check
      _
    $region23: #{_lambda_.1} parent=1 // pred_check_branch
      %31 = sbr.rel (0) target = $region25
    $region24: #{_lambda_.1} parent=1 // pred_region
      _
    $region25: #{_lambda_.1} parent=1 // pred_fallthru
      _
    // Predicated region
    $region26: #{_lambda_.1} parent=1 // pred_check
      _
    $region27: #{_lambda_.1} parent=1 // pred_check_branch
      %33 = sbr.rel (0) target = $region29
    $region28: #{_lambda_.1} parent=1 // pred_region
      _
    $region29: #{_lambda_.1} parent=1 // pred_fallthru
      _
    // Predicated region
    $region30: #{_lambda_.1} parent=1 // pred_check
      _
    $region31: #{_lambda_.1} parent=1 // pred_check_branch
      %35 = sbr.rel (0) target = $region33
    $region32: #{_lambda_.1} parent=1 // pred_region
      %37 = dma.done [#allocation3], 128
    $region33: #{_lambda_.1} parent=1 // pred_fallthru
      _
    %38 = sfence
    %v39 = vld [vmem:[%s3] sm:$0xff]
    %v40 = vld [vmem:[%s3 + $0x8] sm:$0xff]
    %v41 = vld [vmem:[%s3 + $0x10] sm:$0xff]
    %v42 = vld [vmem:[%s3 + $0x18] sm:$0xff]
    %v43 = vld [vmem:[%s5] sm:$0xf]
    %v44 = vld [vmem:[%s6] sm:$0xf]
    %v45 = vld [vmem:[%s1] sm:$0xff]
    %v46 = vld [vmem:[%s1 + $0x8] sm:$0xff]
    %s47 = scalar_lea.vmem %s4, 224
    %v48 = vld [vmem:[%s47] sm:$0xff]
    %v49 = vld [vmem:[%s47 + $0x8] sm:$0xff]
    %v50 = vld [vmem:[%s47 + $0x10] sm:$0xff]
    %v51 = vld [vmem:[%s47 + $0x18] sm:$0xff]
    %53 = vset.pattern.permute.xlu0 0
    %54 = vperm.xlu0 %53, %v48
    %v55 = vpop.permute.xlu0 %54
    %58 = vset.pattern.permute.xlu0 0
    %59 = vperm.xlu0 %58, %v49
    %v60 = vpop.permute.xlu0 %59
    %63 = vset.pattern.permute.xlu0 0
    %64 = vperm.xlu0 %63, %v50
    %v65 = vpop.permute.xlu0 %64
    %68 = vset.pattern.permute.xlu0 0
    %69 = vperm.xlu0 %68, %v51
    %v70 = vpop.permute.xlu0 %69
    %74 = vst [vmem:[#allocation1] ss:$2 sm:$0xff] %v45
    %s75 = scalar_lea.vmem [#allocation1], 16
    %76 = vst [vmem:[%s75] ss:$2 sm:$0xff] %v46
    %v77 = vld.sshfl [vmem:[#allocation1] sm:$0xff pattern:$0x75316420]
    %v78 = vld.sshfl [vmem:[#allocation1 + $0x8] sm:$0xff pattern:$0x75316420]
    %v79 = vld.sshfl [vmem:[#allocation1 + $0x10] sm:$0xff pattern:$0x75316420]
    %v80 = vld.sshfl [vmem:[#allocation1 + $0x18] sm:$0xff pattern:$0x75316420]
    %vm81 = vcmask 31744
    %v83 = vsel %vm81, %v39, 0
    %v86 = vsel %vm81, %v40, 0
    %v89 = vsel %vm81, %v41, 0
    %v92 = vsel %vm81, %v42, 0
    %vm94 = vcmask 1043456
    %v95 = vsel %vm94, %v77, 0
    %v97 = vsel %vm94, %v78, 0
    %v99 = vsel %vm94, %v79, 0
    %v101 = vsel %vm94, %v80, 0
    %103 = vmatpush.msra.mxu0 0.0
    %104 = vmatpush.msra.mxu0 0.0
    %105 = vmatpush.msra.mxu0 0.0
    %106 = vmatpush.msra.mxu0 0.0
    %107 = vmatpush.msra.mxu0 0.0
    %108 = vmatpush.msra.mxu0 0.0
    %109 = vmatpush.msra.mxu0 0.0
    %110 = vmatpush.msra.mxu0 0.0
    %111 = vmatpush.msra.mxu0 0.0
    %112 = vmatpush.msra.mxu0 0.0
    %113 = vmatpush.msra.mxu0 0.0
    %114 = vmatpush.msra.mxu0 0.0
    %115 = vmatpush.msra.mxu0 0.0
    %116 = vmatpush.msra.mxu0 0.0
    %117 = vmatpush.msra.mxu0 0.0
    %118 = vmatpush.msra.mxu0 %v95
    %119 = vmatmul.f32.gmra.mxu0 %v83
    %v120 = vpop.f32.mrf.mxu0
    %v121 = vadd.f32 %v55, %v120
    %122 = vmatmul.f32.gmra.mxu0 %v86
    %v123 = vpop.f32.mrf.mxu0
    %v124 = vadd.f32 %v60, %v123
    %125 = vmatmul.f32.gmra.mxu0 %v89
    %v126 = vpop.f32.mrf.mxu0
    %v127 = vadd.f32 %v65, %v126
    %128 = vmatmul.f32.gmra.mxu0 %v92
    %v129 = vpop.f32.mrf.mxu0
    %v130 = vadd.f32 %v70, %v129
    %131 = vdwg.mxu0
    %132 = vmatpush.msra.mxu0 0.0
    %133 = vmatpush.msra.mxu0 0.0
    %134 = vmatpush.msra.mxu0 0.0
    %135 = vmatpush.msra.mxu0 0.0
    %136 = vmatpush.msra.mxu0 0.0
    %137 = vmatpush.msra.mxu0 0.0
    %138 = vmatpush.msra.mxu0 0.0
    %139 = vmatpush.msra.mxu0 0.0
    %140 = vmatpush.msra.mxu0 0.0
    %141 = vmatpush.msra.mxu0 0.0
    %142 = vmatpush.msra.mxu0 0.0
    %143 = vmatpush.msra.mxu0 0.0
    %144 = vmatpush.msra.mxu0 0.0
    %145 = vmatpush.msra.mxu0 0.0
    %146 = vmatpush.msra.mxu0 0.0
    %147 = vmatpush.msra.mxu0 %v97
    %148 = vmatmul.f32.gmra.mxu0 %v83
    %v149 = vpop.f32.mrf.mxu0
    %v150 = vadd.f32 %v55, %v149
    %151 = vmatmul.f32.gmra.mxu0 %v86
    %v152 = vpop.f32.mrf.mxu0
    %v153 = vadd.f32 %v60, %v152
    %154 = vmatmul.f32.gmra.mxu0 %v89
    %v155 = vpop.f32.mrf.mxu0
    %v156 = vadd.f32 %v65, %v155
    %157 = vmatmul.f32.gmra.mxu0 %v92
    %v158 = vpop.f32.mrf.mxu0
    %v159 = vadd.f32 %v70, %v158
    %160 = vdwg.mxu0
    %161 = vmatpush.msra.mxu0 0.0
    %162 = vmatpush.msra.mxu0 0.0
    %163 = vmatpush.msra.mxu0 0.0
    %164 = vmatpush.msra.mxu0 0.0
    %165 = vmatpush.msra.mxu0 0.0
    %166 = vmatpush.msra.mxu0 0.0
    %167 = vmatpush.msra.mxu0 0.0
    %168 = vmatpush.msra.mxu0 0.0
    %169 = vmatpush.msra.mxu0 0.0
    %170 = vmatpush.msra.mxu0 0.0
    %171 = vmatpush.msra.mxu0 0.0
    %172 = vmatpush.msra.mxu0 0.0
    %173 = vmatpush.msra.mxu0 0.0
    %174 = vmatpush.msra.mxu0 0.0
    %175 = vmatpush.msra.mxu0 0.0
    %176 = vmatpush.msra.mxu0 %v99
    %177 = vmatmul.f32.gmra.mxu0 %v83
    %v178 = vpop.f32.mrf.mxu0
    %v179 = vadd.f32 %v55, %v178
    %180 = vmatmul.f32.gmra.mxu0 %v86
    %v181 = vpop.f32.mrf.mxu0
    %v182 = vadd.f32 %v60, %v181
    %183 = vmatmul.f32.gmra.mxu0 %v89
    %v184 = vpop.f32.mrf.mxu0
    %v185 = vadd.f32 %v65, %v184
    %186 = vmatmul.f32.gmra.mxu0 %v92
    %v187 = vpop.f32.mrf.mxu0
    %v188 = vadd.f32 %v70, %v187
    %189 = vdwg.mxu0
    %190 = vmatpush.msra.mxu0 0.0
    %191 = vmatpush.msra.mxu0 0.0
    %192 = vmatpush.msra.mxu0 0.0
    %193 = vmatpush.msra.mxu0 0.0
    %194 = vmatpush.msra.mxu0 0.0
    %195 = vmatpush.msra.mxu0 0.0
    %196 = vmatpush.msra.mxu0 0.0
    %197 = vmatpush.msra.mxu0 0.0
    %198 = vmatpush.msra.mxu0 0.0
    %199 = vmatpush.msra.mxu0 0.0
    %200 = vmatpush.msra.mxu0 0.0
    %201 = vmatpush.msra.mxu0 0.0
    %202 = vmatpush.msra.mxu0 0.0
    %203 = vmatpush.msra.mxu0 0.0
    %204 = vmatpush.msra.mxu0 0.0
    %205 = vmatpush.msra.mxu0 %v101
    %206 = vmatmul.f32.gmra.mxu0 %v83
    %v207 = vpop.f32.mrf.mxu0
    %v208 = vadd.f32 %v55, %v207
    %209 = vmatmul.f32.gmra.mxu0 %v86
    %v210 = vpop.f32.mrf.mxu0
    %v211 = vadd.f32 %v60, %v210
    %212 = vmatmul.f32.gmra.mxu0 %v89
    %v213 = vpop.f32.mrf.mxu0
    %v214 = vadd.f32 %v65, %v213
    %215 = vmatmul.f32.gmra.mxu0 %v92
    %v216 = vpop.f32.mrf.mxu0
    %v217 = vadd.f32 %v70, %v216
    %218 = vdwg.mxu0
    %v219 = vtanh.pop %v121
    %v220 = vtanh.pop %v150
    %v221 = vtanh.pop %v179
    %v222 = vtanh.pop %v208
    %v223 = vtanh.pop %v124
    %v224 = vtanh.pop %v153
    %v225 = vtanh.pop %v182
    %v226 = vtanh.pop %v211
    %v227 = vtanh.pop %v127
    %v228 = vtanh.pop %v156
    %v229 = vtanh.pop %v185
    %v230 = vtanh.pop %v214
    %v231 = vtanh.pop %v130
    %v232 = vtanh.pop %v159
    %v233 = vtanh.pop %v188
    %v234 = vtanh.pop %v217
    %236 = vset.pattern.permute.xlu0 0
    %237 = vperm.xlu0 %236, %v44
    %v238 = vpop.permute.xlu0 %237
    %vm240 = vcmask 261120
    %v242 = vsel %vm240, %v43, 0
    %244 = vmatpush.msra.mxu0 0.0
    %245 = vmatpush.msra.mxu0 0.0
    %246 = vmatpush.msra.mxu0 0.0
    %247 = vmatpush.msra.mxu0 0.0
    %248 = vmatpush.msra.mxu0 0.0
    %249 = vmatpush.msra.mxu0 0.0
    %250 = vmatpush.msra.mxu0 0.0
    %251 = vmatpush.msra.mxu0 0.0
    %252 = vmatpush.msra.mxu0 0.0
    %253 = vmatpush.msra.mxu0 0.0
    %254 = vmatpush.msra.mxu0 0.0
    %255 = vmatpush.msra.mxu0 0.0
    %256 = vmatpush.msra.mxu0 %v231
    %257 = vmatpush.msra.mxu0 %v227
    %258 = vmatpush.msra.mxu0 %v223
    %259 = vmatpush.msra.mxu0 %v219
    %260 = vmatmul.f32.gmra.mxu0 %v242
    %v261 = vpop.f32.mrf.mxu0
    %v262 = vadd.f32 %v238, %v261
    %263 = vdwg.mxu0
    %264 = vmatpush.msra.mxu0 0.0
    %265 = vmatpush.msra.mxu0 0.0
    %266 = vmatpush.msra.mxu0 0.0
    %267 = vmatpush.msra.mxu0 0.0
    %268 = vmatpush.msra.mxu0 0.0
    %269 = vmatpush.msra.mxu0 0.0
    %270 = vmatpush.msra.mxu0 0.0
    %271 = vmatpush.msra.mxu0 0.0
    %272 = vmatpush.msra.mxu0 0.0
    %273 = vmatpush.msra.mxu0 0.0
    %274 = vmatpush.msra.mxu0 0.0
    %275 = vmatpush.msra.mxu0 0.0
    %276 = vmatpush.msra.mxu0 %v232
    %277 = vmatpush.msra.mxu0 %v228
    %278 = vmatpush.msra.mxu0 %v224
    %279 = vmatpush.msra.mxu0 %v220
    %280 = vmatmul.f32.gmra.mxu0 %v242
    %v281 = vpop.f32.mrf.mxu0
    %v282 = vadd.f32 %v238, %v281
    %283 = vdwg.mxu0
    %284 = vmatpush.msra.mxu0 0.0
    %285 = vmatpush.msra.mxu0 0.0
    %286 = vmatpush.msra.mxu0 0.0
    %287 = vmatpush.msra.mxu0 0.0
    %288 = vmatpush.msra.mxu0 0.0
    %289 = vmatpush.msra.mxu0 0.0
    %290 = vmatpush.msra.mxu0 0.0
    %291 = vmatpush.msra.mxu0 0.0
    %292 = vmatpush.msra.mxu0 0.0
    %293 = vmatpush.msra.mxu0 0.0
    %294 = vmatpush.msra.mxu0 0.0
    %295 = vmatpush.msra.mxu0 0.0
    %296 = vmatpush.msra.mxu0 %v233
    %297 = vmatpush.msra.mxu0 %v229
    %298 = vmatpush.msra.mxu0 %v225
    %299 = vmatpush.msra.mxu0 %v221
    %300 = vmatmul.f32.gmra.mxu0 %v242
    %v301 = vpop.f32.mrf.mxu0
    %v302 = vadd.f32 %v238, %v301
    %303 = vdwg.mxu0
    %304 = vmatpush.msra.mxu0 0.0
    %305 = vmatpush.msra.mxu0 0.0
    %306 = vmatpush.msra.mxu0 0.0
    %307 = vmatpush.msra.mxu0 0.0
    %308 = vmatpush.msra.mxu0 0.0
    %309 = vmatpush.msra.mxu0 0.0
    %310 = vmatpush.msra.mxu0 0.0
    %311 = vmatpush.msra.mxu0 0.0
    %312 = vmatpush.msra.mxu0 0.0
    %313 = vmatpush.msra.mxu0 0.0
    %314 = vmatpush.msra.mxu0 0.0
    %315 = vmatpush.msra.mxu0 0.0
    %316 = vmatpush.msra.mxu0 %v234
    %317 = vmatpush.msra.mxu0 %v230
    %318 = vmatpush.msra.mxu0 %v226
    %319 = vmatpush.msra.mxu0 %v222
    %320 = vmatmul.f32.gmra.mxu0 %v242
    %v321 = vpop.f32.mrf.mxu0
    %v322 = vadd.f32 %v238, %v321
    %323 = vdwg.mxu0
    %s324 = sld [smem:[#allocation2 + $0x380]]
    %s325 = sld [smem:[#allocation2 + $0x381]]
    %s326 = sld [smem:[#allocation2 + $0x382]]
    %v327 = vstv %s324
    %v328 = vmul.f32 %v327, %v45
    %v329 = vmul.f32 %v327, %v46
    %v330 = vstv %s325
    %v331 = vmul.f32 %v330, %v262
    %v332 = vmul.f32 %v330, %v282
    %v333 = vmul.f32 %v330, %v302
    %v334 = vmul.f32 %v330, %v322
    %v339 = vrot.slane %v332, 4
    %v340 = vrot.slane %v334, 4
    %v341 = vsel %vm94, %v331, %v339
    %v342 = vsel %vm94, %v333, %v340
    %v345 = vsub.f32 %v328, %v341
    %v346 = vsub.f32 %v329, %v342
    %s347 = scalar_lea.vmem %s2, 112
    %v348 = vld [vmem:[%s347] sm:$0xff]
    %v349 = vld [vmem:[%s347 + $0x8] sm:$0xff]
    %v350 = vstv %s326
    %v351 = vmul.f32 %v350, %v348
    %v352 = vmul.f32 %v350, %v349
    %v353 = vadd.f32 %v345, %v351
    %v354 = vadd.f32 %v346, %v352
    %s355 = scalar_lea.vmem %s4, 192
    %v356 = vld [vmem:[%s355] sm:$0xff]
    %v357 = vld [vmem:[%s355 + $0x8] sm:$0xff]
    %v358 = vld [vmem:[%s355 + $0x10] sm:$0xff]
    %v359 = vld [vmem:[%s355 + $0x18] sm:$0xff]
    %361 = vset.pattern.permute.xlu0 0
    %362 = vperm.xlu0 %361, %v356
    %v363 = vpop.permute.xlu0 %362
    %366 = vset.pattern.permute.xlu0 0
    %367 = vperm.xlu0 %366, %v357
    %v368 = vpop.permute.xlu0 %367
    %371 = vset.pattern.permute.xlu0 0
    %372 = vperm.xlu0 %371, %v358
    %v373 = vpop.permute.xlu0 %372
    %376 = vset.pattern.permute.xlu0 0
    %377 = vperm.xlu0 %376, %v359
    %v378 = vpop.permute.xlu0 %377
    %382 = vst [vmem:[#allocation1] ss:$2 sm:$0xff] %v353
    %s383 = scalar_lea.vmem [#allocation1], 16
    %384 = vst [vmem:[%s383] ss:$2 sm:$0xff] %v354
    %v385 = vld.sshfl [vmem:[#allocation1] sm:$0xff pattern:$0x75316420]
    %v386 = vld.sshfl [vmem:[#allocation1 + $0x8] sm:$0xff pattern:$0x75316420]
    %v387 = vld.sshfl [vmem:[#allocation1 + $0x10] sm:$0xff pattern:$0x75316420]
    %v388 = vld.sshfl [vmem:[#allocation1 + $0x18] sm:$0xff pattern:$0x75316420]
    %v389 = vsel %vm94, %v385, 0
    %v391 = vsel %vm94, %v386, 0
    %v393 = vsel %vm94, %v387, 0
    %v395 = vsel %vm94, %v388, 0
    %397 = vmatpush.msra.mxu0 0.0
    %398 = vmatpush.msra.mxu0 0.0
    %399 = vmatpush.msra.mxu0 0.0
    %400 = vmatpush.msra.mxu0 0.0
    %401 = vmatpush.msra.mxu0 0.0
    %402 = vmatpush.msra.mxu0 0.0
    %403 = vmatpush.msra.mxu0 0.0
    %404 = vmatpush.msra.mxu0 0.0
    %405 = vmatpush.msra.mxu0 0.0
    %406 = vmatpush.msra.mxu0 0.0
    %407 = vmatpush.msra.mxu0 0.0
    %408 = vmatpush.msra.mxu0 0.0
    %409 = vmatpush.msra.mxu0 0.0
    %410 = vmatpush.msra.mxu0 0.0
    %411 = vmatpush.msra.mxu0 0.0
    %412 = vmatpush.msra.mxu0 %v389
    %413 = vmatmul.f32.gmra.mxu0 %v83
    %v414 = vpop.f32.mrf.mxu0
    %v415 = vadd.f32 %v363, %v414
    %416 = vmatmul.f32.gmra.mxu0 %v86
    %v417 = vpop.f32.mrf.mxu0
    %v418 = vadd.f32 %v368, %v417
    %419 = vmatmul.f32.gmra.mxu0 %v89
    %v420 = vpop.f32.mrf.mxu0
    %v421 = vadd.f32 %v373, %v420
    %422 = vmatmul.f32.gmra.mxu0 %v92
    %v423 = vpop.f32.mrf.mxu0
    %v424 = vadd.f32 %v378, %v423
    %425 = vdwg.mxu0
    %426 = vmatpush.msra.mxu0 0.0
    %427 = vmatpush.msra.mxu0 0.0
    %428 = vmatpush.msra.mxu0 0.0
    %429 = vmatpush.msra.mxu0 0.0
    %430 = vmatpush.msra.mxu0 0.0
    %431 = vmatpush.msra.mxu0 0.0
    %432 = vmatpush.msra.mxu0 0.0
    %433 = vmatpush.msra.mxu0 0.0
    %434 = vmatpush.msra.mxu0 0.0
    %435 = vmatpush.msra.mxu0 0.0
    %436 = vmatpush.msra.mxu0 0.0
    %437 = vmatpush.msra.mxu0 0.0
    %438 = vmatpush.msra.mxu0 0.0
    %439 = vmatpush.msra.mxu0 0.0
    %440 = vmatpush.msra.mxu0 0.0
    %441 = vmatpush.msra.mxu0 %v391
    %442 = vmatmul.f32.gmra.mxu0 %v83
    %v443 = vpop.f32.mrf.mxu0
    %v444 = vadd.f32 %v363, %v443
    %445 = vmatmul.f32.gmra.mxu0 %v86
    %v446 = vpop.f32.mrf.mxu0
    %v447 = vadd.f32 %v368, %v446
    %448 = vmatmul.f32.gmra.mxu0 %v89
    %v449 = vpop.f32.mrf.mxu0
    %v450 = vadd.f32 %v373, %v449
    %451 = vmatmul.f32.gmra.mxu0 %v92
    %v452 = vpop.f32.mrf.mxu0
    %v453 = vadd.f32 %v378, %v452
    %454 = vdwg.mxu0
    %455 = vmatpush.msra.mxu0 0.0
    %456 = vmatpush.msra.mxu0 0.0
    %457 = vmatpush.msra.mxu0 0.0
    %458 = vmatpush.msra.mxu0 0.0
    %459 = vmatpush.msra.mxu0 0.0
    %460 = vmatpush.msra.mxu0 0.0
    %461 = vmatpush.msra.mxu0 0.0
    %462 = vmatpush.msra.mxu0 0.0
    %463 = vmatpush.msra.mxu0 0.0
    %464 = vmatpush.msra.mxu0 0.0
    %465 = vmatpush.msra.mxu0 0.0
    %466 = vmatpush.msra.mxu0 0.0
    %467 = vmatpush.msra.mxu0 0.0
    %468 = vmatpush.msra.mxu0 0.0
    %469 = vmatpush.msra.mxu0 0.0
    %470 = vmatpush.msra.mxu0 %v393
    %471 = vmatmul.f32.gmra.mxu0 %v83
    %v472 = vpop.f32.mrf.mxu0
    %v473 = vadd.f32 %v363, %v472
    %474 = vmatmul.f32.gmra.mxu0 %v86
    %v475 = vpop.f32.mrf.mxu0
    %v476 = vadd.f32 %v368, %v475
    %477 = vmatmul.f32.gmra.mxu0 %v89
    %v478 = vpop.f32.mrf.mxu0
    %v479 = vadd.f32 %v373, %v478
    %480 = vmatmul.f32.gmra.mxu0 %v92
    %v481 = vpop.f32.mrf.mxu0
    %v482 = vadd.f32 %v378, %v481
    %483 = vdwg.mxu0
    %484 = vmatpush.msra.mxu0 0.0
    %485 = vmatpush.msra.mxu0 0.0
    %486 = vmatpush.msra.mxu0 0.0
    %487 = vmatpush.msra.mxu0 0.0
    %488 = vmatpush.msra.mxu0 0.0
    %489 = vmatpush.msra.mxu0 0.0
    %490 = vmatpush.msra.mxu0 0.0
    %491 = vmatpush.msra.mxu0 0.0
    %492 = vmatpush.msra.mxu0 0.0
    %493 = vmatpush.msra.mxu0 0.0
    %494 = vmatpush.msra.mxu0 0.0
    %495 = vmatpush.msra.mxu0 0.0
    %496 = vmatpush.msra.mxu0 0.0
    %497 = vmatpush.msra.mxu0 0.0
    %498 = vmatpush.msra.mxu0 0.0
    %499 = vmatpush.msra.mxu0 %v395
    %500 = vmatmul.f32.gmra.mxu0 %v83
    %v501 = vpop.f32.mrf.mxu0
    %v502 = vadd.f32 %v363, %v501
    %503 = vmatmul.f32.gmra.mxu0 %v86
    %v504 = vpop.f32.mrf.mxu0
    %v505 = vadd.f32 %v368, %v504
    %506 = vmatmul.f32.gmra.mxu0 %v89
    %v507 = vpop.f32.mrf.mxu0
    %v508 = vadd.f32 %v373, %v507
    %509 = vmatmul.f32.gmra.mxu0 %v92
    %v510 = vpop.f32.mrf.mxu0
    %v511 = vadd.f32 %v378, %v510
    %512 = vdwg.mxu0
    %v513 = vtanh.pop %v415
    %v514 = vtanh.pop %v444
    %v515 = vtanh.pop %v473
    %v516 = vtanh.pop %v502
    %v517 = vtanh.pop %v418
    %v518 = vtanh.pop %v447
    %v519 = vtanh.pop %v476
    %v520 = vtanh.pop %v505
    %v521 = vtanh.pop %v421
    %v522 = vtanh.pop %v450
    %v523 = vtanh.pop %v479
    %v524 = vtanh.pop %v508
    %v525 = vtanh.pop %v424
    %v526 = vtanh.pop %v453
    %v527 = vtanh.pop %v482
    %v528 = vtanh.pop %v511
    %529 = vmatpush.msra.mxu0 0.0
    %530 = vmatpush.msra.mxu0 0.0
    %531 = vmatpush.msra.mxu0 0.0
    %532 = vmatpush.msra.mxu0 0.0
    %533 = vmatpush.msra.mxu0 0.0
    %534 = vmatpush.msra.mxu0 0.0
    %535 = vmatpush.msra.mxu0 0.0
    %536 = vmatpush.msra.mxu0 0.0
    %537 = vmatpush.msra.mxu0 0.0
    %538 = vmatpush.msra.mxu0 0.0
    %539 = vmatpush.msra.mxu0 0.0
    %540 = vmatpush.msra.mxu0 0.0
    %541 = vmatpush.msra.mxu0 %v525
    %542 = vmatpush.msra.mxu0 %v521
    %543 = vmatpush.msra.mxu0 %v517
    %544 = vmatpush.msra.mxu0 %v513
    %545 = vmatmul.f32.gmra.mxu0 %v242
    %v546 = vpop.f32.mrf.mxu0
    %v547 = vadd.f32 %v238, %v546
    %548 = vdwg.mxu0
    %549 = vmatpush.msra.mxu0 0.0
    %550 = vmatpush.msra.mxu0 0.0
    %551 = vmatpush.msra.mxu0 0.0
    %552 = vmatpush.msra.mxu0 0.0
    %553 = vmatpush.msra.mxu0 0.0
    %554 = vmatpush.msra.mxu0 0.0
    %555 = vmatpush.msra.mxu0 0.0
    %556 = vmatpush.msra.mxu0 0.0
    %557 = vmatpush.msra.mxu0 0.0
    %558 = vmatpush.msra.mxu0 0.0
    %559 = vmatpush.msra.mxu0 0.0
    %560 = vmatpush.msra.mxu0 0.0
    %561 = vmatpush.msra.mxu0 %v526
    %562 = vmatpush.msra.mxu0 %v522
    %563 = vmatpush.msra.mxu0 %v518
    %564 = vmatpush.msra.mxu0 %v514
    %565 = vmatmul.f32.gmra.mxu0 %v242
    %v566 = vpop.f32.mrf.mxu0
    %v567 = vadd.f32 %v238, %v566
    %568 = vdwg.mxu0
    %569 = vmatpush.msra.mxu0 0.0
    %570 = vmatpush.msra.mxu0 0.0
    %571 = vmatpush.msra.mxu0 0.0
    %572 = vmatpush.msra.mxu0 0.0
    %573 = vmatpush.msra.mxu0 0.0
    %574 = vmatpush.msra.mxu0 0.0
    %575 = vmatpush.msra.mxu0 0.0
    %576 = vmatpush.msra.mxu0 0.0
    %577 = vmatpush.msra.mxu0 0.0
    %578 = vmatpush.msra.mxu0 0.0
    %579 = vmatpush.msra.mxu0 0.0
    %580 = vmatpush.msra.mxu0 0.0
    %581 = vmatpush.msra.mxu0 %v527
    %582 = vmatpush.msra.mxu0 %v523
    %583 = vmatpush.msra.mxu0 %v519
    %584 = vmatpush.msra.mxu0 %v515
    %585 = vmatmul.f32.gmra.mxu0 %v242
    %v586 = vpop.f32.mrf.mxu0
    %v587 = vadd.f32 %v238, %v586
    %588 = vdwg.mxu0
    %589 = vmatpush.msra.mxu0 0.0
    %590 = vmatpush.msra.mxu0 0.0
    %591 = vmatpush.msra.mxu0 0.0
    %592 = vmatpush.msra.mxu0 0.0
    %593 = vmatpush.msra.mxu0 0.0
    %594 = vmatpush.msra.mxu0 0.0
    %595 = vmatpush.msra.mxu0 0.0
    %596 = vmatpush.msra.mxu0 0.0
    %597 = vmatpush.msra.mxu0 0.0
    %598 = vmatpush.msra.mxu0 0.0
    %599 = vmatpush.msra.mxu0 0.0
    %600 = vmatpush.msra.mxu0 0.0
    %601 = vmatpush.msra.mxu0 %v528
    %602 = vmatpush.msra.mxu0 %v524
    %603 = vmatpush.msra.mxu0 %v520
    %604 = vmatpush.msra.mxu0 %v516
    %605 = vmatmul.f32.gmra.mxu0 %v242
    %v606 = vpop.f32.mrf.mxu0
    %v607 = vadd.f32 %v238, %v606
    %608 = vdwg.mxu0
    %s609 = sld [smem:[#allocation2 + $0x300]]
    %s610 = sld [smem:[#allocation2 + $0x301]]
    %s611 = sld [smem:[#allocation2 + $0x302]]
    %v612 = vstv %s609
    %v613 = vmul.f32 %v612, %v353
    %v614 = vmul.f32 %v612, %v354
    %v615 = vstv %s610
    %v616 = vmul.f32 %v615, %v547
    %v617 = vmul.f32 %v615, %v567
    %v618 = vmul.f32 %v615, %v587
    %v619 = vmul.f32 %v615, %v607
    %v624 = vrot.slane %v617, 4
    %v625 = vrot.slane %v619, 4
    %v626 = vsel %vm94, %v616, %v624
    %v627 = vsel %vm94, %v618, %v625
    %v630 = vsub.f32 %v613, %v626
    %v631 = vsub.f32 %v614, %v627
    %s632 = scalar_lea.vmem %s2, 96
    %v633 = vld [vmem:[%s632] sm:$0xff]
    %v634 = vld [vmem:[%s632 + $0x8] sm:$0xff]
    %v635 = vstv %s611
    %v636 = vmul.f32 %v635, %v633
    %v637 = vmul.f32 %v635, %v634
    %v638 = vadd.f32 %v630, %v636
    %v639 = vadd.f32 %v631, %v637
    %s640 = scalar_lea.vmem %s4, 160
    %v641 = vld [vmem:[%s640] sm:$0xff]
    %v642 = vld [vmem:[%s640 + $0x8] sm:$0xff]
    %v643 = vld [vmem:[%s640 + $0x10] sm:$0xff]
    %v644 = vld [vmem:[%s640 + $0x18] sm:$0xff]
    %646 = vset.pattern.permute.xlu0 0
    %647 = vperm.xlu0 %646, %v641
    %v648 = vpop.permute.xlu0 %647
    %651 = vset.pattern.permute.xlu0 0
    %652 = vperm.xlu0 %651, %v642
    %v653 = vpop.permute.xlu0 %652
    %656 = vset.pattern.permute.xlu0 0
    %657 = vperm.xlu0 %656, %v643
    %v658 = vpop.permute.xlu0 %657
    %661 = vset.pattern.permute.xlu0 0
    %662 = vperm.xlu0 %661, %v644
    %v663 = vpop.permute.xlu0 %662
    %667 = vst [vmem:[#allocation1] ss:$2 sm:$0xff] %v638
    %s668 = scalar_lea.vmem [#allocation1], 16
    %669 = vst [vmem:[%s668] ss:$2 sm:$0xff] %v639
    %v670 = vld.sshfl [vmem:[#allocation1] sm:$0xff pattern:$0x75316420]
    %v671 = vld.sshfl [vmem:[#allocation1 + $0x8] sm:$0xff pattern:$0x75316420]
    %v672 = vld.sshfl [vmem:[#allocation1 + $0x10] sm:$0xff pattern:$0x75316420]
    %v673 = vld.sshfl [vmem:[#allocation1 + $0x18] sm:$0xff pattern:$0x75316420]
    %v674 = vsel %vm94, %v670, 0
    %v676 = vsel %vm94, %v671, 0
    %v678 = vsel %vm94, %v672, 0
    %v680 = vsel %vm94, %v673, 0
    %682 = vmatpush.msra.mxu0 0.0
    %683 = vmatpush.msra.mxu0 0.0
    %684 = vmatpush.msra.mxu0 0.0
    %685 = vmatpush.msra.mxu0 0.0
    %686 = vmatpush.msra.mxu0 0.0
    %687 = vmatpush.msra.mxu0 0.0
    %688 = vmatpush.msra.mxu0 0.0
    %689 = vmatpush.msra.mxu0 0.0
    %690 = vmatpush.msra.mxu0 0.0
    %691 = vmatpush.msra.mxu0 0.0
    %692 = vmatpush.msra.mxu0 0.0
    %693 = vmatpush.msra.mxu0 0.0
    %694 = vmatpush.msra.mxu0 0.0
    %695 = vmatpush.msra.mxu0 0.0
    %696 = vmatpush.msra.mxu0 0.0
    %697 = vmatpush.msra.mxu0 %v674
    %698 = vmatmul.f32.gmra.mxu0 %v83
    %v699 = vpop.f32.mrf.mxu0
    %v700 = vadd.f32 %v648, %v699
    %701 = vmatmul.f32.gmra.mxu0 %v86
    %v702 = vpop.f32.mrf.mxu0
    %v703 = vadd.f32 %v653, %v702
    %704 = vmatmul.f32.gmra.mxu0 %v89
    %v705 = vpop.f32.mrf.mxu0
    %v706 = vadd.f32 %v658, %v705
    %707 = vmatmul.f32.gmra.mxu0 %v92
    %v708 = vpop.f32.mrf.mxu0
    %v709 = vadd.f32 %v663, %v708
    %710 = vdwg.mxu0
    %711 = vmatpush.msra.mxu0 0.0
    %712 = vmatpush.msra.mxu0 0.0
    %713 = vmatpush.msra.mxu0 0.0
    %714 = vmatpush.msra.mxu0 0.0
    %715 = vmatpush.msra.mxu0 0.0
    %716 = vmatpush.msra.mxu0 0.0
    %717 = vmatpush.msra.mxu0 0.0
    %718 = vmatpush.msra.mxu0 0.0
    %719 = vmatpush.msra.mxu0 0.0
    %720 = vmatpush.msra.mxu0 0.0
    %721 = vmatpush.msra.mxu0 0.0
    %722 = vmatpush.msra.mxu0 0.0
    %723 = vmatpush.msra.mxu0 0.0
    %724 = vmatpush.msra.mxu0 0.0
    %725 = vmatpush.msra.mxu0 0.0
    %726 = vmatpush.msra.mxu0 %v676
    %727 = vmatmul.f32.gmra.mxu0 %v83
    %v728 = vpop.f32.mrf.mxu0
    %v729 = vadd.f32 %v648, %v728
    %730 = vmatmul.f32.gmra.mxu0 %v86
    %v731 = vpop.f32.mrf.mxu0
    %v732 = vadd.f32 %v653, %v731
    %733 = vmatmul.f32.gmra.mxu0 %v89
    %v734 = vpop.f32.mrf.mxu0
    %v735 = vadd.f32 %v658, %v734
    %736 = vmatmul.f32.gmra.mxu0 %v92
    %v737 = vpop.f32.mrf.mxu0
    %v738 = vadd.f32 %v663, %v737
    %739 = vdwg.mxu0
    %740 = vmatpush.msra.mxu0 0.0
    %741 = vmatpush.msra.mxu0 0.0
    %742 = vmatpush.msra.mxu0 0.0
    %743 = vmatpush.msra.mxu0 0.0
    %744 = vmatpush.msra.mxu0 0.0
    %745 = vmatpush.msra.mxu0 0.0
    %746 = vmatpush.msra.mxu0 0.0
    %747 = vmatpush.msra.mxu0 0.0
    %748 = vmatpush.msra.mxu0 0.0
    %749 = vmatpush.msra.mxu0 0.0
    %750 = vmatpush.msra.mxu0 0.0
    %751 = vmatpush.msra.mxu0 0.0
    %752 = vmatpush.msra.mxu0 0.0
    %753 = vmatpush.msra.mxu0 0.0
    %754 = vmatpush.msra.mxu0 0.0
    %755 = vmatpush.msra.mxu0 %v678
    %756 = vmatmul.f32.gmra.mxu0 %v83
    %v757 = vpop.f32.mrf.mxu0
    %v758 = vadd.f32 %v648, %v757
    %759 = vmatmul.f32.gmra.mxu0 %v86
    %v760 = vpop.f32.mrf.mxu0
    %v761 = vadd.f32 %v653, %v760
    %762 = vmatmul.f32.gmra.mxu0 %v89
    %v763 = vpop.f32.mrf.mxu0
    %v764 = vadd.f32 %v658, %v763
    %765 = vmatmul.f32.gmra.mxu0 %v92
    %v766 = vpop.f32.mrf.mxu0
    %v767 = vadd.f32 %v663, %v766
    %768 = vdwg.mxu0
    %769 = vmatpush.msra.mxu0 0.0
    %770 = vmatpush.msra.mxu0 0.0
    %771 = vmatpush.msra.mxu0 0.0
    %772 = vmatpush.msra.mxu0 0.0
    %773 = vmatpush.msra.mxu0 0.0
    %774 = vmatpush.msra.mxu0 0.0
    %775 = vmatpush.msra.mxu0 0.0
    %776 = vmatpush.msra.mxu0 0.0
    %777 = vmatpush.msra.mxu0 0.0
    %778 = vmatpush.msra.mxu0 0.0
    %779 = vmatpush.msra.mxu0 0.0
    %780 = vmatpush.msra.mxu0 0.0
    %781 = vmatpush.msra.mxu0 0.0
    %782 = vmatpush.msra.mxu0 0.0
    %783 = vmatpush.msra.mxu0 0.0
    %784 = vmatpush.msra.mxu0 %v680
    %785 = vmatmul.f32.gmra.mxu0 %v83
    %v786 = vpop.f32.mrf.mxu0
    %v787 = vadd.f32 %v648, %v786
    %788 = vmatmul.f32.gmra.mxu0 %v86
    %v789 = vpop.f32.mrf.mxu0
    %v790 = vadd.f32 %v653, %v789
    %791 = vmatmul.f32.gmra.mxu0 %v89
    %v792 = vpop.f32.mrf.mxu0
    %v793 = vadd.f32 %v658, %v792
    %794 = vmatmul.f32.gmra.mxu0 %v92
    %v795 = vpop.f32.mrf.mxu0
    %v796 = vadd.f32 %v663, %v795
    %797 = vdwg.mxu0
    %v798 = vtanh.pop %v700
    %v799 = vtanh.pop %v729
    %v800 = vtanh.pop %v758
    %v801 = vtanh.pop %v787
    %v802 = vtanh.pop %v703
    %v803 = vtanh.pop %v732
    %v804 = vtanh.pop %v761
    %v805 = vtanh.pop %v790
    %v806 = vtanh.pop %v706
    %v807 = vtanh.pop %v735
    %v808 = vtanh.pop %v764
    %v809 = vtanh.pop %v793
    %v810 = vtanh.pop %v709
    %v811 = vtanh.pop %v738
    %v812 = vtanh.pop %v767
    %v813 = vtanh.pop %v796
    %814 = vmatpush.msra.mxu0 0.0
    %815 = vmatpush.msra.mxu0 0.0
    %816 = vmatpush.msra.mxu0 0.0
    %817 = vmatpush.msra.mxu0 0.0
    %818 = vmatpush.msra.mxu0 0.0
    %819 = vmatpush.msra.mxu0 0.0
    %820 = vmatpush.msra.mxu0 0.0
    %821 = vmatpush.msra.mxu0 0.0
    %822 = vmatpush.msra.mxu0 0.0
    %823 = vmatpush.msra.mxu0 0.0
    %824 = vmatpush.msra.mxu0 0.0
    %825 = vmatpush.msra.mxu0 0.0
    %826 = vmatpush.msra.mxu0 %v810
    %827 = vmatpush.msra.mxu0 %v806
    %828 = vmatpush.msra.mxu0 %v802
    %829 = vmatpush.msra.mxu0 %v798
    %830 = vmatmul.f32.gmra.mxu0 %v242
    %v831 = vpop.f32.mrf.mxu0
    %v832 = vadd.f32 %v238, %v831
    %833 = vdwg.mxu0
    %834 = vmatpush.msra.mxu0 0.0
    %835 = vmatpush.msra.mxu0 0.0
    %836 = vmatpush.msra.mxu0 0.0
    %837 = vmatpush.msra.mxu0 0.0
    %838 = vmatpush.msra.mxu0 0.0
    %839 = vmatpush.msra.mxu0 0.0
    %840 = vmatpush.msra.mxu0 0.0
    %841 = vmatpush.msra.mxu0 0.0
    %842 = vmatpush.msra.mxu0 0.0
    %843 = vmatpush.msra.mxu0 0.0
    %844 = vmatpush.msra.mxu0 0.0
    %845 = vmatpush.msra.mxu0 0.0
    %846 = vmatpush.msra.mxu0 %v811
    %847 = vmatpush.msra.mxu0 %v807
    %848 = vmatpush.msra.mxu0 %v803
    %849 = vmatpush.msra.mxu0 %v799
    %850 = vmatmul.f32.gmra.mxu0 %v242
    %v851 = vpop.f32.mrf.mxu0
    %v852 = vadd.f32 %v238, %v851
    %853 = vdwg.mxu0
    %854 = vmatpush.msra.mxu0 0.0
    %855 = vmatpush.msra.mxu0 0.0
    %856 = vmatpush.msra.mxu0 0.0
    %857 = vmatpush.msra.mxu0 0.0
    %858 = vmatpush.msra.mxu0 0.0
    %859 = vmatpush.msra.mxu0 0.0
    %860 = vmatpush.msra.mxu0 0.0
    %861 = vmatpush.msra.mxu0 0.0
    %862 = vmatpush.msra.mxu0 0.0
    %863 = vmatpush.msra.mxu0 0.0
    %864 = vmatpush.msra.mxu0 0.0
    %865 = vmatpush.msra.mxu0 0.0
    %866 = vmatpush.msra.mxu0 %v812
    %867 = vmatpush.msra.mxu0 %v808
    %868 = vmatpush.msra.mxu0 %v804
    %869 = vmatpush.msra.mxu0 %v800
    %870 = vmatmul.f32.gmra.mxu0 %v242
    %v871 = vpop.f32.mrf.mxu0
    %v872 = vadd.f32 %v238, %v871
    %873 = vdwg.mxu0
    %874 = vmatpush.msra.mxu0 0.0
    %875 = vmatpush.msra.mxu0 0.0
    %876 = vmatpush.msra.mxu0 0.0
    %877 = vmatpush.msra.mxu0 0.0
    %878 = vmatpush.msra.mxu0 0.0
    %879 = vmatpush.msra.mxu0 0.0
    %880 = vmatpush.msra.mxu0 0.0
    %881 = vmatpush.msra.mxu0 0.0
    %882 = vmatpush.msra.mxu0 0.0
    %883 = vmatpush.msra.mxu0 0.0
    %884 = vmatpush.msra.mxu0 0.0
    %885 = vmatpush.msra.mxu0 0.0
    %886 = vmatpush.msra.mxu0 %v813
    %887 = vmatpush.msra.mxu0 %v809
    %888 = vmatpush.msra.mxu0 %v805
    %889 = vmatpush.msra.mxu0 %v801
    %890 = vmatmul.f32.gmra.mxu0 %v242
    %v891 = vpop.f32.mrf.mxu0
    %v892 = vadd.f32 %v238, %v891
    %893 = vdwg.mxu0
    %s894 = sld [smem:[#allocation2 + $0x280]]
    %s895 = sld [smem:[#allocation2 + $0x281]]
    %s896 = sld [smem:[#allocation2 + $0x282]]
    %v897 = vstv %s894
    %v898 = vmul.f32 %v897, %v638
    %v899 = vmul.f32 %v897, %v639
    %v900 = vstv %s895
    %v901 = vmul.f32 %v900, %v832
    %v902 = vmul.f32 %v900, %v852
    %v903 = vmul.f32 %v900, %v872
    %v904 = vmul.f32 %v900, %v892
    %v909 = vrot.slane %v902, 4
    %v910 = vrot.slane %v904, 4
    %v911 = vsel %vm94, %v901, %v909
    %v912 = vsel %vm94, %v903, %v910
    %v915 = vsub.f32 %v898, %v911
    %v916 = vsub.f32 %v899, %v912
    %s917 = scalar_lea.vmem %s2, 80
    %v918 = vld [vmem:[%s917] sm:$0xff]
    %v919 = vld [vmem:[%s917 + $0x8] sm:$0xff]
    %v920 = vstv %s896
    %v921 = vmul.f32 %v920, %v918
    %v922 = vmul.f32 %v920, %v919
    %v923 = vadd.f32 %v915, %v921
    %v924 = vadd.f32 %v916, %v922
    %s925 = scalar_lea.vmem %s4, 128
    %v926 = vld [vmem:[%s925] sm:$0xff]
    %v927 = vld [vmem:[%s925 + $0x8] sm:$0xff]
    %v928 = vld [vmem:[%s925 + $0x10] sm:$0xff]
    %v929 = vld [vmem:[%s925 + $0x18] sm:$0xff]
    %931 = vset.pattern.permute.xlu0 0
    %932 = vperm.xlu0 %931, %v926
    %v933 = vpop.permute.xlu0 %932
    %936 = vset.pattern.permute.xlu0 0
    %937 = vperm.xlu0 %936, %v927
    %v938 = vpop.permute.xlu0 %937
    %941 = vset.pattern.permute.xlu0 0
    %942 = vperm.xlu0 %941, %v928
    %v943 = vpop.permute.xlu0 %942
    %946 = vset.pattern.permute.xlu0 0
    %947 = vperm.xlu0 %946, %v929
    %v948 = vpop.permute.xlu0 %947
    %952 = vst [vmem:[#allocation1] ss:$2 sm:$0xff] %v923
    %s953 = scalar_lea.vmem [#allocation1], 16
    %954 = vst [vmem:[%s953] ss:$2 sm:$0xff] %v924
    %v955 = vld.sshfl [vmem:[#allocation1] sm:$0xff pattern:$0x75316420]
    %v956 = vld.sshfl [vmem:[#allocation1 + $0x8] sm:$0xff pattern:$0x75316420]
    %v957 = vld.sshfl [vmem:[#allocation1 + $0x10] sm:$0xff pattern:$0x75316420]
    %v958 = vld.sshfl [vmem:[#allocation1 + $0x18] sm:$0xff pattern:$0x75316420]
    %v959 = vsel %vm94, %v955, 0
    %v961 = vsel %vm94, %v956, 0
    %v963 = vsel %vm94, %v957, 0
    %v965 = vsel %vm94, %v958, 0
    %967 = vmatpush.msra.mxu0 0.0
    %968 = vmatpush.msra.mxu0 0.0
    %969 = vmatpush.msra.mxu0 0.0
    %970 = vmatpush.msra.mxu0 0.0
    %971 = vmatpush.msra.mxu0 0.0
    %972 = vmatpush.msra.mxu0 0.0
    %973 = vmatpush.msra.mxu0 0.0
    %974 = vmatpush.msra.mxu0 0.0
    %975 = vmatpush.msra.mxu0 0.0
    %976 = vmatpush.msra.mxu0 0.0
    %977 = vmatpush.msra.mxu0 0.0
    %978 = vmatpush.msra.mxu0 0.0
    %979 = vmatpush.msra.mxu0 0.0
    %980 = vmatpush.msra.mxu0 0.0
    %981 = vmatpush.msra.mxu0 0.0
    %982 = vmatpush.msra.mxu0 %v959
    %983 = vmatmul.f32.gmra.mxu0 %v83
    %v984 = vpop.f32.mrf.mxu0
    %v985 = vadd.f32 %v933, %v984
    %986 = vmatmul.f32.gmra.mxu0 %v86
    %v987 = vpop.f32.mrf.mxu0
    %v988 = vadd.f32 %v938, %v987
    %989 = vmatmul.f32.gmra.mxu0 %v89
    %v990 = vpop.f32.mrf.mxu0
    %v991 = vadd.f32 %v943, %v990
    %992 = vmatmul.f32.gmra.mxu0 %v92
    %v993 = vpop.f32.mrf.mxu0
    %v994 = vadd.f32 %v948, %v993
    %995 = vdwg.mxu0
    %996 = vmatpush.msra.mxu0 0.0
    %997 = vmatpush.msra.mxu0 0.0
    %998 = vmatpush.msra.mxu0 0.0
    %999 = vmatpush.msra.mxu0 0.0
    %1000 = vmatpush.msra.mxu0 0.0
    %1001 = vmatpush.msra.mxu0 0.0
    %1002 = vmatpush.msra.mxu0 0.0
    %1003 = vmatpush.msra.mxu0 0.0
    %1004 = vmatpush.msra.mxu0 0.0
    %1005 = vmatpush.msra.mxu0 0.0
    %1006 = vmatpush.msra.mxu0 0.0
    %1007 = vmatpush.msra.mxu0 0.0
    %1008 = vmatpush.msra.mxu0 0.0
    %1009 = vmatpush.msra.mxu0 0.0
    %1010 = vmatpush.msra.mxu0 0.0
    %1011 = vmatpush.msra.mxu0 %v961
    %1012 = vmatmul.f32.gmra.mxu0 %v83
    %v1013 = vpop.f32.mrf.mxu0
    %v1014 = vadd.f32 %v933, %v1013
    %1015 = vmatmul.f32.gmra.mxu0 %v86
    %v1016 = vpop.f32.mrf.mxu0
    %v1017 = vadd.f32 %v938, %v1016
    %1018 = vmatmul.f32.gmra.mxu0 %v89
    %v1019 = vpop.f32.mrf.mxu0
    %v1020 = vadd.f32 %v943, %v1019
    %1021 = vmatmul.f32.gmra.mxu0 %v92
    %v1022 = vpop.f32.mrf.mxu0
    %v1023 = vadd.f32 %v948, %v1022
    %1024 = vdwg.mxu0
    %1025 = vmatpush.msra.mxu0 0.0
    %1026 = vmatpush.msra.mxu0 0.0
    %1027 = vmatpush.msra.mxu0 0.0
    %1028 = vmatpush.msra.mxu0 0.0
    %1029 = vmatpush.msra.mxu0 0.0
    %1030 = vmatpush.msra.mxu0 0.0
    %1031 = vmatpush.msra.mxu0 0.0
    %1032 = vmatpush.msra.mxu0 0.0
    %1033 = vmatpush.msra.mxu0 0.0
    %1034 = vmatpush.msra.mxu0 0.0
    %1035 = vmatpush.msra.mxu0 0.0
    %1036 = vmatpush.msra.mxu0 0.0
    %1037 = vmatpush.msra.mxu0 0.0
    %1038 = vmatpush.msra.mxu0 0.0
    %1039 = vmatpush.msra.mxu0 0.0
    %1040 = vmatpush.msra.mxu0 %v963
    %1041 = vmatmul.f32.gmra.mxu0 %v83
    %v1042 = vpop.f32.mrf.mxu0
    %v1043 = vadd.f32 %v933, %v1042
    %1044 = vmatmul.f32.gmra.mxu0 %v86
    %v1045 = vpop.f32.mrf.mxu0
    %v1046 = vadd.f32 %v938, %v1045
    %1047 = vmatmul.f32.gmra.mxu0 %v89
    %v1048 = vpop.f32.mrf.mxu0
    %v1049 = vadd.f32 %v943, %v1048
    %1050 = vmatmul.f32.gmra.mxu0 %v92
    %v1051 = vpop.f32.mrf.mxu0
    %v1052 = vadd.f32 %v948, %v1051
    %1053 = vdwg.mxu0
    %1054 = vmatpush.msra.mxu0 0.0
    %1055 = vmatpush.msra.mxu0 0.0
    %1056 = vmatpush.msra.mxu0 0.0
    %1057 = vmatpush.msra.mxu0 0.0
    %1058 = vmatpush.msra.mxu0 0.0
    %1059 = vmatpush.msra.mxu0 0.0
    %1060 = vmatpush.msra.mxu0 0.0
    %1061 = vmatpush.msra.mxu0 0.0
    %1062 = vmatpush.msra.mxu0 0.0
    %1063 = vmatpush.msra.mxu0 0.0
    %1064 = vmatpush.msra.mxu0 0.0
    %1065 = vmatpush.msra.mxu0 0.0
    %1066 = vmatpush.msra.mxu0 0.0
    %1067 = vmatpush.msra.mxu0 0.0
    %1068 = vmatpush.msra.mxu0 0.0
    %1069 = vmatpush.msra.mxu0 %v965
    %1070 = vmatmul.f32.gmra.mxu0 %v83
    %v1071 = vpop.f32.mrf.mxu0
    %v1072 = vadd.f32 %v933, %v1071
    %1073 = vmatmul.f32.gmra.mxu0 %v86
    %v1074 = vpop.f32.mrf.mxu0
    %v1075 = vadd.f32 %v938, %v1074
    %1076 = vmatmul.f32.gmra.mxu0 %v89
    %v1077 = vpop.f32.mrf.mxu0
    %v1078 = vadd.f32 %v943, %v1077
    %1079 = vmatmul.f32.gmra.mxu0 %v92
    %v1080 = vpop.f32.mrf.mxu0
    %v1081 = vadd.f32 %v948, %v1080
    %1082 = vdwg.mxu0
    %v1083 = vtanh.pop %v985
    %v1084 = vtanh.pop %v1014
    %v1085 = vtanh.pop %v1043
    %v1086 = vtanh.pop %v1072
    %v1087 = vtanh.pop %v988
    %v1088 = vtanh.pop %v1017
    %v1089 = vtanh.pop %v1046
    %v1090 = vtanh.pop %v1075
    %v1091 = vtanh.pop %v991
    %v1092 = vtanh.pop %v1020
    %v1093 = vtanh.pop %v1049
    %v1094 = vtanh.pop %v1078
    %v1095 = vtanh.pop %v994
    %v1096 = vtanh.pop %v1023
    %v1097 = vtanh.pop %v1052
    %v1098 = vtanh.pop %v1081
    %1099 = vmatpush.msra.mxu0 0.0
    %1100 = vmatpush.msra.mxu0 0.0
    %1101 = vmatpush.msra.mxu0 0.0
    %1102 = vmatpush.msra.mxu0 0.0
    %1103 = vmatpush.msra.mxu0 0.0
    %1104 = vmatpush.msra.mxu0 0.0
    %1105 = vmatpush.msra.mxu0 0.0
    %1106 = vmatpush.msra.mxu0 0.0
    %1107 = vmatpush.msra.mxu0 0.0
    %1108 = vmatpush.msra.mxu0 0.0
    %1109 = vmatpush.msra.mxu0 0.0
    %1110 = vmatpush.msra.mxu0 0.0
    %1111 = vmatpush.msra.mxu0 %v1095
    %1112 = vmatpush.msra.mxu0 %v1091
    %1113 = vmatpush.msra.mxu0 %v1087
    %1114 = vmatpush.msra.mxu0 %v1083
    %1115 = vmatmul.f32.gmra.mxu0 %v242
    %v1116 = vpop.f32.mrf.mxu0
    %v1117 = vadd.f32 %v238, %v1116
    %1118 = vdwg.mxu0
    %1119 = vmatpush.msra.mxu0 0.0
    %1120 = vmatpush.msra.mxu0 0.0
    %1121 = vmatpush.msra.mxu0 0.0
    %1122 = vmatpush.msra.mxu0 0.0
    %1123 = vmatpush.msra.mxu0 0.0
    %1124 = vmatpush.msra.mxu0 0.0
    %1125 = vmatpush.msra.mxu0 0.0
    %1126 = vmatpush.msra.mxu0 0.0
    %1127 = vmatpush.msra.mxu0 0.0
    %1128 = vmatpush.msra.mxu0 0.0
    %1129 = vmatpush.msra.mxu0 0.0
    %1130 = vmatpush.msra.mxu0 0.0
    %1131 = vmatpush.msra.mxu0 %v1096
    %1132 = vmatpush.msra.mxu0 %v1092
    %1133 = vmatpush.msra.mxu0 %v1088
    %1134 = vmatpush.msra.mxu0 %v1084
    %1135 = vmatmul.f32.gmra.mxu0 %v242
    %v1136 = vpop.f32.mrf.mxu0
    %v1137 = vadd.f32 %v238, %v1136
    %1138 = vdwg.mxu0
    %1139 = vmatpush.msra.mxu0 0.0
    %1140 = vmatpush.msra.mxu0 0.0
    %1141 = vmatpush.msra.mxu0 0.0
    %1142 = vmatpush.msra.mxu0 0.0
    %1143 = vmatpush.msra.mxu0 0.0
    %1144 = vmatpush.msra.mxu0 0.0
    %1145 = vmatpush.msra.mxu0 0.0
    %1146 = vmatpush.msra.mxu0 0.0
    %1147 = vmatpush.msra.mxu0 0.0
    %1148 = vmatpush.msra.mxu0 0.0
    %1149 = vmatpush.msra.mxu0 0.0
    %1150 = vmatpush.msra.mxu0 0.0
    %1151 = vmatpush.msra.mxu0 %v1097
    %1152 = vmatpush.msra.mxu0 %v1093
    %1153 = vmatpush.msra.mxu0 %v1089
    %1154 = vmatpush.msra.mxu0 %v1085
    %1155 = vmatmul.f32.gmra.mxu0 %v242
    %v1156 = vpop.f32.mrf.mxu0
    %v1157 = vadd.f32 %v238, %v1156
    %1158 = vdwg.mxu0
    %1159 = vmatpush.msra.mxu0 0.0
    %1160 = vmatpush.msra.mxu0 0.0
    %1161 = vmatpush.msra.mxu0 0.0
    %1162 = vmatpush.msra.mxu0 0.0
    %1163 = vmatpush.msra.mxu0 0.0
    %1164 = vmatpush.msra.mxu0 0.0
    %1165 = vmatpush.msra.mxu0 0.0
    %1166 = vmatpush.msra.mxu0 0.0
    %1167 = vmatpush.msra.mxu0 0.0
    %1168 = vmatpush.msra.mxu0 0.0
    %1169 = vmatpush.msra.mxu0 0.0
    %1170 = vmatpush.msra.mxu0 0.0
    %1171 = vmatpush.msra.mxu0 %v1098
    %1172 = vmatpush.msra.mxu0 %v1094
    %1173 = vmatpush.msra.mxu0 %v1090
    %1174 = vmatpush.msra.mxu0 %v1086
    %1175 = vmatmul.f32.gmra.mxu0 %v242
    %v1176 = vpop.f32.mrf.mxu0
    %v1177 = vadd.f32 %v238, %v1176
    %1178 = vdwg.mxu0
    %s1179 = sld [smem:[#allocation2 + $0x200]]
    %s1180 = sld [smem:[#allocation2 + $0x201]]
    %s1181 = sld [smem:[#allocation2 + $0x202]]
    %v1182 = vstv %s1179
    %v1183 = vmul.f32 %v1182, %v923
    %v1184 = vmul.f32 %v1182, %v924
    %v1185 = vstv %s1180
    %v1186 = vmul.f32 %v1185, %v1117
    %v1187 = vmul.f32 %v1185, %v1137
    %v1188 = vmul.f32 %v1185, %v1157
    %v1189 = vmul.f32 %v1185, %v1177
    %v1194 = vrot.slane %v1187, 4
    %v1195 = vrot.slane %v1189, 4
    %v1196 = vsel %vm94, %v1186, %v1194
    %v1197 = vsel %vm94, %v1188, %v1195
    %v1200 = vsub.f32 %v1183, %v1196
    %v1201 = vsub.f32 %v1184, %v1197
    %s1202 = scalar_lea.vmem %s2, 64
    %v1203 = vld [vmem:[%s1202] sm:$0xff]
    %v1204 = vld [vmem:[%s1202 + $0x8] sm:$0xff]
    %v1205 = vstv %s1181
    %v1206 = vmul.f32 %v1205, %v1203
    %v1207 = vmul.f32 %v1205, %v1204
    %v1208 = vadd.f32 %v1200, %v1206
    %v1209 = vadd.f32 %v1201, %v1207
    %s1210 = scalar_lea.vmem %s4, 96
    %v1211 = vld [vmem:[%s1210] sm:$0xff]
    %v1212 = vld [vmem:[%s1210 + $0x8] sm:$0xff]
    %v1213 = vld [vmem:[%s1210 + $0x10] sm:$0xff]
    %v1214 = vld [vmem:[%s1210 + $0x18] sm:$0xff]
    %1216 = vset.pattern.permute.xlu0 0
    %1217 = vperm.xlu0 %1216, %v1211
    %v1218 = vpop.permute.xlu0 %1217
    %1221 = vset.pattern.permute.xlu0 0
    %1222 = vperm.xlu0 %1221, %v1212
    %v1223 = vpop.permute.xlu0 %1222
    %1226 = vset.pattern.permute.xlu0 0
    %1227 = vperm.xlu0 %1226, %v1213
    %v1228 = vpop.permute.xlu0 %1227
    %1231 = vset.pattern.permute.xlu0 0
    %1232 = vperm.xlu0 %1231, %v1214
    %v1233 = vpop.permute.xlu0 %1232
    %1237 = vst [vmem:[#allocation1] ss:$2 sm:$0xff] %v1208
    %s1238 = scalar_lea.vmem [#allocation1], 16
    %1239 = vst [vmem:[%s1238] ss:$2 sm:$0xff] %v1209
    %v1240 = vld.sshfl [vmem:[#allocation1] sm:$0xff pattern:$0x75316420]
    %v1241 = vld.sshfl [vmem:[#allocation1 + $0x8] sm:$0xff pattern:$0x75316420]
    %v1242 = vld.sshfl [vmem:[#allocation1 + $0x10] sm:$0xff pattern:$0x75316420]
    %v1243 = vld.sshfl [vmem:[#allocation1 + $0x18] sm:$0xff pattern:$0x75316420]
    %v1244 = vsel %vm94, %v1240, 0
    %v1246 = vsel %vm94, %v1241, 0
    %v1248 = vsel %vm94, %v1242, 0
    %v1250 = vsel %vm94, %v1243, 0
    %1252 = vmatpush.msra.mxu0 0.0
    %1253 = vmatpush.msra.mxu0 0.0
    %1254 = vmatpush.msra.mxu0 0.0
    %1255 = vmatpush.msra.mxu0 0.0
    %1256 = vmatpush.msra.mxu0 0.0
    %1257 = vmatpush.msra.mxu0 0.0
    %1258 = vmatpush.msra.mxu0 0.0
    %1259 = vmatpush.msra.mxu0 0.0
    %1260 = vmatpush.msra.mxu0 0.0
    %1261 = vmatpush.msra.mxu0 0.0
    %1262 = vmatpush.msra.mxu0 0.0
    %1263 = vmatpush.msra.mxu0 0.0
    %1264 = vmatpush.msra.mxu0 0.0
    %1265 = vmatpush.msra.mxu0 0.0
    %1266 = vmatpush.msra.mxu0 0.0
    %1267 = vmatpush.msra.mxu0 %v1244
    %1268 = vmatmul.f32.gmra.mxu0 %v83
    %v1269 = vpop.f32.mrf.mxu0
    %v1270 = vadd.f32 %v1218, %v1269
    %1271 = vmatmul.f32.gmra.mxu0 %v86
    %v1272 = vpop.f32.mrf.mxu0
    %v1273 = vadd.f32 %v1223, %v1272
    %1274 = vmatmul.f32.gmra.mxu0 %v89
    %v1275 = vpop.f32.mrf.mxu0
    %v1276 = vadd.f32 %v1228, %v1275
    %1277 = vmatmul.f32.gmra.mxu0 %v92
    %v1278 = vpop.f32.mrf.mxu0
    %v1279 = vadd.f32 %v1233, %v1278
    %1280 = vdwg.mxu0
    %1281 = vmatpush.msra.mxu0 0.0
    %1282 = vmatpush.msra.mxu0 0.0
    %1283 = vmatpush.msra.mxu0 0.0
    %1284 = vmatpush.msra.mxu0 0.0
    %1285 = vmatpush.msra.mxu0 0.0
    %1286 = vmatpush.msra.mxu0 0.0
    %1287 = vmatpush.msra.mxu0 0.0
    %1288 = vmatpush.msra.mxu0 0.0
    %1289 = vmatpush.msra.mxu0 0.0
    %1290 = vmatpush.msra.mxu0 0.0
    %1291 = vmatpush.msra.mxu0 0.0
    %1292 = vmatpush.msra.mxu0 0.0
    %1293 = vmatpush.msra.mxu0 0.0
    %1294 = vmatpush.msra.mxu0 0.0
    %1295 = vmatpush.msra.mxu0 0.0
    %1296 = vmatpush.msra.mxu0 %v1246
    %1297 = vmatmul.f32.gmra.mxu0 %v83
    %v1298 = vpop.f32.mrf.mxu0
    %v1299 = vadd.f32 %v1218, %v1298
    %1300 = vmatmul.f32.gmra.mxu0 %v86
    %v1301 = vpop.f32.mrf.mxu0
    %v1302 = vadd.f32 %v1223, %v1301
    %1303 = vmatmul.f32.gmra.mxu0 %v89
    %v1304 = vpop.f32.mrf.mxu0
    %v1305 = vadd.f32 %v1228, %v1304
    %1306 = vmatmul.f32.gmra.mxu0 %v92
    %v1307 = vpop.f32.mrf.mxu0
    %v1308 = vadd.f32 %v1233, %v1307
    %1309 = vdwg.mxu0
    %1310 = vmatpush.msra.mxu0 0.0
    %1311 = vmatpush.msra.mxu0 0.0
    %1312 = vmatpush.msra.mxu0 0.0
    %1313 = vmatpush.msra.mxu0 0.0
    %1314 = vmatpush.msra.mxu0 0.0
    %1315 = vmatpush.msra.mxu0 0.0
    %1316 = vmatpush.msra.mxu0 0.0
    %1317 = vmatpush.msra.mxu0 0.0
    %1318 = vmatpush.msra.mxu0 0.0
    %1319 = vmatpush.msra.mxu0 0.0
    %1320 = vmatpush.msra.mxu0 0.0
    %1321 = vmatpush.msra.mxu0 0.0
    %1322 = vmatpush.msra.mxu0 0.0
    %1323 = vmatpush.msra.mxu0 0.0
    %1324 = vmatpush.msra.mxu0 0.0
    %1325 = vmatpush.msra.mxu0 %v1248
    %1326 = vmatmul.f32.gmra.mxu0 %v83
    %v1327 = vpop.f32.mrf.mxu0
    %v1328 = vadd.f32 %v1218, %v1327
    %1329 = vmatmul.f32.gmra.mxu0 %v86
    %v1330 = vpop.f32.mrf.mxu0
    %v1331 = vadd.f32 %v1223, %v1330
    %1332 = vmatmul.f32.gmra.mxu0 %v89
    %v1333 = vpop.f32.mrf.mxu0
    %v1334 = vadd.f32 %v1228, %v1333
    %1335 = vmatmul.f32.gmra.mxu0 %v92
    %v1336 = vpop.f32.mrf.mxu0
    %v1337 = vadd.f32 %v1233, %v1336
    %1338 = vdwg.mxu0
    %1339 = vmatpush.msra.mxu0 0.0
    %1340 = vmatpush.msra.mxu0 0.0
    %1341 = vmatpush.msra.mxu0 0.0
    %1342 = vmatpush.msra.mxu0 0.0
    %1343 = vmatpush.msra.mxu0 0.0
    %1344 = vmatpush.msra.mxu0 0.0
    %1345 = vmatpush.msra.mxu0 0.0
    %1346 = vmatpush.msra.mxu0 0.0
    %1347 = vmatpush.msra.mxu0 0.0
    %1348 = vmatpush.msra.mxu0 0.0
    %1349 = vmatpush.msra.mxu0 0.0
    %1350 = vmatpush.msra.mxu0 0.0
    %1351 = vmatpush.msra.mxu0 0.0
    %1352 = vmatpush.msra.mxu0 0.0
    %1353 = vmatpush.msra.mxu0 0.0
    %1354 = vmatpush.msra.mxu0 %v1250
    %1355 = vmatmul.f32.gmra.mxu0 %v83
    %v1356 = vpop.f32.mrf.mxu0
    %v1357 = vadd.f32 %v1218, %v1356
    %1358 = vmatmul.f32.gmra.mxu0 %v86
    %v1359 = vpop.f32.mrf.mxu0
    %v1360 = vadd.f32 %v1223, %v1359
    %1361 = vmatmul.f32.gmra.mxu0 %v89
    %v1362 = vpop.f32.mrf.mxu0
    %v1363 = vadd.f32 %v1228, %v1362
    %1364 = vmatmul.f32.gmra.mxu0 %v92
    %v1365 = vpop.f32.mrf.mxu0
    %v1366 = vadd.f32 %v1233, %v1365
    %1367 = vdwg.mxu0
    %v1368 = vtanh.pop %v1270
    %v1369 = vtanh.pop %v1299
    %v1370 = vtanh.pop %v1328
    %v1371 = vtanh.pop %v1357
    %v1372 = vtanh.pop %v1273
    %v1373 = vtanh.pop %v1302
    %v1374 = vtanh.pop %v1331
    %v1375 = vtanh.pop %v1360
    %v1376 = vtanh.pop %v1276
    %v1377 = vtanh.pop %v1305
    %v1378 = vtanh.pop %v1334
    %v1379 = vtanh.pop %v1363
    %v1380 = vtanh.pop %v1279
    %v1381 = vtanh.pop %v1308
    %v1382 = vtanh.pop %v1337
    %v1383 = vtanh.pop %v1366
    %1384 = vmatpush.msra.mxu0 0.0
    %1385 = vmatpush.msra.mxu0 0.0
    %1386 = vmatpush.msra.mxu0 0.0
    %1387 = vmatpush.msra.mxu0 0.0
    %1388 = vmatpush.msra.mxu0 0.0
    %1389 = vmatpush.msra.mxu0 0.0
    %1390 = vmatpush.msra.mxu0 0.0
    %1391 = vmatpush.msra.mxu0 0.0
    %1392 = vmatpush.msra.mxu0 0.0
    %1393 = vmatpush.msra.mxu0 0.0
    %1394 = vmatpush.msra.mxu0 0.0
    %1395 = vmatpush.msra.mxu0 0.0
    %1396 = vmatpush.msra.mxu0 %v1380
    %1397 = vmatpush.msra.mxu0 %v1376
    %1398 = vmatpush.msra.mxu0 %v1372
    %1399 = vmatpush.msra.mxu0 %v1368
    %1400 = vmatmul.f32.gmra.mxu0 %v242
    %v1401 = vpop.f32.mrf.mxu0
    %v1402 = vadd.f32 %v238, %v1401
    %1403 = vdwg.mxu0
    %1404 = vmatpush.msra.mxu0 0.0
    %1405 = vmatpush.msra.mxu0 0.0
    %1406 = vmatpush.msra.mxu0 0.0
    %1407 = vmatpush.msra.mxu0 0.0
    %1408 = vmatpush.msra.mxu0 0.0
    %1409 = vmatpush.msra.mxu0 0.0
    %1410 = vmatpush.msra.mxu0 0.0
    %1411 = vmatpush.msra.mxu0 0.0
    %1412 = vmatpush.msra.mxu0 0.0
    %1413 = vmatpush.msra.mxu0 0.0
    %1414 = vmatpush.msra.mxu0 0.0
    %1415 = vmatpush.msra.mxu0 0.0
    %1416 = vmatpush.msra.mxu0 %v1381
    %1417 = vmatpush.msra.mxu0 %v1377
    %1418 = vmatpush.msra.mxu0 %v1373
    %1419 = vmatpush.msra.mxu0 %v1369
    %1420 = vmatmul.f32.gmra.mxu0 %v242
    %v1421 = vpop.f32.mrf.mxu0
    %v1422 = vadd.f32 %v238, %v1421
    %1423 = vdwg.mxu0
    %1424 = vmatpush.msra.mxu0 0.0
    %1425 = vmatpush.msra.mxu0 0.0
    %1426 = vmatpush.msra.mxu0 0.0
    %1427 = vmatpush.msra.mxu0 0.0
    %1428 = vmatpush.msra.mxu0 0.0
    %1429 = vmatpush.msra.mxu0 0.0
    %1430 = vmatpush.msra.mxu0 0.0
    %1431 = vmatpush.msra.mxu0 0.0
    %1432 = vmatpush.msra.mxu0 0.0
    %1433 = vmatpush.msra.mxu0 0.0
    %1434 = vmatpush.msra.mxu0 0.0
    %1435 = vmatpush.msra.mxu0 0.0
    %1436 = vmatpush.msra.mxu0 %v1382
    %1437 = vmatpush.msra.mxu0 %v1378
    %1438 = vmatpush.msra.mxu0 %v1374
    %1439 = vmatpush.msra.mxu0 %v1370
    %1440 = vmatmul.f32.gmra.mxu0 %v242
    %v1441 = vpop.f32.mrf.mxu0
    %v1442 = vadd.f32 %v238, %v1441
    %1443 = vdwg.mxu0
    %1444 = vmatpush.msra.mxu0 0.0
    %1445 = vmatpush.msra.mxu0 0.0
    %1446 = vmatpush.msra.mxu0 0.0
    %1447 = vmatpush.msra.mxu0 0.0
    %1448 = vmatpush.msra.mxu0 0.0
    %1449 = vmatpush.msra.mxu0 0.0
    %1450 = vmatpush.msra.mxu0 0.0
    %1451 = vmatpush.msra.mxu0 0.0
    %1452 = vmatpush.msra.mxu0 0.0
    %1453 = vmatpush.msra.mxu0 0.0
    %1454 = vmatpush.msra.mxu0 0.0
    %1455 = vmatpush.msra.mxu0 0.0
    %1456 = vmatpush.msra.mxu0 %v1383
    %1457 = vmatpush.msra.mxu0 %v1379
    %1458 = vmatpush.msra.mxu0 %v1375
    %1459 = vmatpush.msra.mxu0 %v1371
    %1460 = vmatmul.f32.gmra.mxu0 %v242
    %v1461 = vpop.f32.mrf.mxu0
    %v1462 = vadd.f32 %v238, %v1461
    %1463 = vdwg.mxu0
    %s1464 = sld [smem:[#allocation2 + $0x180]]
    %s1465 = sld [smem:[#allocation2 + $0x181]]
    %s1466 = sld [smem:[#allocation2 + $0x182]]
    %v1467 = vstv %s1464
    %v1468 = vmul.f32 %v1467, %v1208
    %v1469 = vmul.f32 %v1467, %v1209
    %v1470 = vstv %s1465
    %v1471 = vmul.f32 %v1470, %v1402
    %v1472 = vmul.f32 %v1470, %v1422
    %v1473 = vmul.f32 %v1470, %v1442
    %v1474 = vmul.f32 %v1470, %v1462
    %v1479 = vrot.slane %v1472, 4
    %v1480 = vrot.slane %v1474, 4
    %v1481 = vsel %vm94, %v1471, %v1479
    %v1482 = vsel %vm94, %v1473, %v1480
    %v1485 = vsub.f32 %v1468, %v1481
    %v1486 = vsub.f32 %v1469, %v1482
    %s1487 = scalar_lea.vmem %s2, 48
    %v1488 = vld [vmem:[%s1487] sm:$0xff]
    %v1489 = vld [vmem:[%s1487 + $0x8] sm:$0xff]
    %v1490 = vstv %s1466
    %v1491 = vmul.f32 %v1490, %v1488
    %v1492 = vmul.f32 %v1490, %v1489
    %v1493 = vadd.f32 %v1485, %v1491
    %v1494 = vadd.f32 %v1486, %v1492
    %s1495 = scalar_lea.vmem %s4, 64
    %v1496 = vld [vmem:[%s1495] sm:$0xff]
    %v1497 = vld [vmem:[%s1495 + $0x8] sm:$0xff]
    %v1498 = vld [vmem:[%s1495 + $0x10] sm:$0xff]
    %v1499 = vld [vmem:[%s1495 + $0x18] sm:$0xff]
    %1501 = vset.pattern.permute.xlu0 0
    %1502 = vperm.xlu0 %1501, %v1496
    %v1503 = vpop.permute.xlu0 %1502
    %1506 = vset.pattern.permute.xlu0 0
    %1507 = vperm.xlu0 %1506, %v1497
    %v1508 = vpop.permute.xlu0 %1507
    %1511 = vset.pattern.permute.xlu0 0
    %1512 = vperm.xlu0 %1511, %v1498
    %v1513 = vpop.permute.xlu0 %1512
    %1516 = vset.pattern.permute.xlu0 0
    %1517 = vperm.xlu0 %1516, %v1499
    %v1518 = vpop.permute.xlu0 %1517
    %1522 = vst [vmem:[#allocation1] ss:$2 sm:$0xff] %v1493
    %s1523 = scalar_lea.vmem [#allocation1], 16
    %1524 = vst [vmem:[%s1523] ss:$2 sm:$0xff] %v1494
    %v1525 = vld.sshfl [vmem:[#allocation1] sm:$0xff pattern:$0x75316420]
    %v1526 = vld.sshfl [vmem:[#allocation1 + $0x8] sm:$0xff pattern:$0x75316420]
    %v1527 = vld.sshfl [vmem:[#allocation1 + $0x10] sm:$0xff pattern:$0x75316420]
    %v1528 = vld.sshfl [vmem:[#allocation1 + $0x18] sm:$0xff pattern:$0x75316420]
    %v1529 = vsel %vm94, %v1525, 0
    %v1531 = vsel %vm94, %v1526, 0
    %v1533 = vsel %vm94, %v1527, 0
    %v1535 = vsel %vm94, %v1528, 0
    %1537 = vmatpush.msra.mxu0 0.0
    %1538 = vmatpush.msra.mxu0 0.0
    %1539 = vmatpush.msra.mxu0 0.0
    %1540 = vmatpush.msra.mxu0 0.0
    %1541 = vmatpush.msra.mxu0 0.0
    %1542 = vmatpush.msra.mxu0 0.0
    %1543 = vmatpush.msra.mxu0 0.0
    %1544 = vmatpush.msra.mxu0 0.0
    %1545 = vmatpush.msra.mxu0 0.0
    %1546 = vmatpush.msra.mxu0 0.0
    %1547 = vmatpush.msra.mxu0 0.0
    %1548 = vmatpush.msra.mxu0 0.0
    %1549 = vmatpush.msra.mxu0 0.0
    %1550 = vmatpush.msra.mxu0 0.0
    %1551 = vmatpush.msra.mxu0 0.0
    %1552 = vmatpush.msra.mxu0 %v1529
    %1553 = vmatmul.f32.gmra.mxu0 %v83
    %v1554 = vpop.f32.mrf.mxu0
    %v1555 = vadd.f32 %v1503, %v1554
    %1556 = vmatmul.f32.gmra.mxu0 %v86
    %v1557 = vpop.f32.mrf.mxu0
    %v1558 = vadd.f32 %v1508, %v1557
    %1559 = vmatmul.f32.gmra.mxu0 %v89
    %v1560 = vpop.f32.mrf.mxu0
    %v1561 = vadd.f32 %v1513, %v1560
    %1562 = vmatmul.f32.gmra.mxu0 %v92
    %v1563 = vpop.f32.mrf.mxu0
    %v1564 = vadd.f32 %v1518, %v1563
    %1565 = vdwg.mxu0
    %1566 = vmatpush.msra.mxu0 0.0
    %1567 = vmatpush.msra.mxu0 0.0
    %1568 = vmatpush.msra.mxu0 0.0
    %1569 = vmatpush.msra.mxu0 0.0
    %1570 = vmatpush.msra.mxu0 0.0
    %1571 = vmatpush.msra.mxu0 0.0
    %1572 = vmatpush.msra.mxu0 0.0
    %1573 = vmatpush.msra.mxu0 0.0
    %1574 = vmatpush.msra.mxu0 0.0
    %1575 = vmatpush.msra.mxu0 0.0
    %1576 = vmatpush.msra.mxu0 0.0
    %1577 = vmatpush.msra.mxu0 0.0
    %1578 = vmatpush.msra.mxu0 0.0
    %1579 = vmatpush.msra.mxu0 0.0
    %1580 = vmatpush.msra.mxu0 0.0
    %1581 = vmatpush.msra.mxu0 %v1531
    %1582 = vmatmul.f32.gmra.mxu0 %v83
    %v1583 = vpop.f32.mrf.mxu0
    %v1584 = vadd.f32 %v1503, %v1583
    %1585 = vmatmul.f32.gmra.mxu0 %v86
    %v1586 = vpop.f32.mrf.mxu0
    %v1587 = vadd.f32 %v1508, %v1586
    %1588 = vmatmul.f32.gmra.mxu0 %v89
    %v1589 = vpop.f32.mrf.mxu0
    %v1590 = vadd.f32 %v1513, %v1589
    %1591 = vmatmul.f32.gmra.mxu0 %v92
    %v1592 = vpop.f32.mrf.mxu0
    %v1593 = vadd.f32 %v1518, %v1592
    %1594 = vdwg.mxu0
    %1595 = vmatpush.msra.mxu0 0.0
    %1596 = vmatpush.msra.mxu0 0.0
    %1597 = vmatpush.msra.mxu0 0.0
    %1598 = vmatpush.msra.mxu0 0.0
    %1599 = vmatpush.msra.mxu0 0.0
    %1600 = vmatpush.msra.mxu0 0.0
    %1601 = vmatpush.msra.mxu0 0.0
    %1602 = vmatpush.msra.mxu0 0.0
    %1603 = vmatpush.msra.mxu0 0.0
    %1604 = vmatpush.msra.mxu0 0.0
    %1605 = vmatpush.msra.mxu0 0.0
    %1606 = vmatpush.msra.mxu0 0.0
    %1607 = vmatpush.msra.mxu0 0.0
    %1608 = vmatpush.msra.mxu0 0.0
    %1609 = vmatpush.msra.mxu0 0.0
    %1610 = vmatpush.msra.mxu0 %v1533
    %1611 = vmatmul.f32.gmra.mxu0 %v83
    %v1612 = vpop.f32.mrf.mxu0
    %v1613 = vadd.f32 %v1503, %v1612
    %1614 = vmatmul.f32.gmra.mxu0 %v86
    %v1615 = vpop.f32.mrf.mxu0
    %v1616 = vadd.f32 %v1508, %v1615
    %1617 = vmatmul.f32.gmra.mxu0 %v89
    %v1618 = vpop.f32.mrf.mxu0
    %v1619 = vadd.f32 %v1513, %v1618
    %1620 = vmatmul.f32.gmra.mxu0 %v92
    %v1621 = vpop.f32.mrf.mxu0
    %v1622 = vadd.f32 %v1518, %v1621
    %1623 = vdwg.mxu0
    %1624 = vmatpush.msra.mxu0 0.0
    %1625 = vmatpush.msra.mxu0 0.0
    %1626 = vmatpush.msra.mxu0 0.0
    %1627 = vmatpush.msra.mxu0 0.0
    %1628 = vmatpush.msra.mxu0 0.0
    %1629 = vmatpush.msra.mxu0 0.0
    %1630 = vmatpush.msra.mxu0 0.0
    %1631 = vmatpush.msra.mxu0 0.0
    %1632 = vmatpush.msra.mxu0 0.0
    %1633 = vmatpush.msra.mxu0 0.0
    %1634 = vmatpush.msra.mxu0 0.0
    %1635 = vmatpush.msra.mxu0 0.0
    %1636 = vmatpush.msra.mxu0 0.0
    %1637 = vmatpush.msra.mxu0 0.0
    %1638 = vmatpush.msra.mxu0 0.0
    %1639 = vmatpush.msra.mxu0 %v1535
    %1640 = vmatmul.f32.gmra.mxu0 %v83
    %v1641 = vpop.f32.mrf.mxu0
    %v1642 = vadd.f32 %v1503, %v1641
    %1643 = vmatmul.f32.gmra.mxu0 %v86
    %v1644 = vpop.f32.mrf.mxu0
    %v1645 = vadd.f32 %v1508, %v1644
    %1646 = vmatmul.f32.gmra.mxu0 %v89
    %v1647 = vpop.f32.mrf.mxu0
    %v1648 = vadd.f32 %v1513, %v1647
    %1649 = vmatmul.f32.gmra.mxu0 %v92
    %v1650 = vpop.f32.mrf.mxu0
    %v1651 = vadd.f32 %v1518, %v1650
    %1652 = vdwg.mxu0
    %v1653 = vtanh.pop %v1555
    %v1654 = vtanh.pop %v1584
    %v1655 = vtanh.pop %v1613
    %v1656 = vtanh.pop %v1642
    %v1657 = vtanh.pop %v1558
    %v1658 = vtanh.pop %v1587
    %v1659 = vtanh.pop %v1616
    %v1660 = vtanh.pop %v1645
    %v1661 = vtanh.pop %v1561
    %v1662 = vtanh.pop %v1590
    %v1663 = vtanh.pop %v1619
    %v1664 = vtanh.pop %v1648
    %v1665 = vtanh.pop %v1564
    %v1666 = vtanh.pop %v1593
    %v1667 = vtanh.pop %v1622
    %v1668 = vtanh.pop %v1651
    %1669 = vmatpush.msra.mxu0 0.0
    %1670 = vmatpush.msra.mxu0 0.0
    %1671 = vmatpush.msra.mxu0 0.0
    %1672 = vmatpush.msra.mxu0 0.0
    %1673 = vmatpush.msra.mxu0 0.0
    %1674 = vmatpush.msra.mxu0 0.0
    %1675 = vmatpush.msra.mxu0 0.0
    %1676 = vmatpush.msra.mxu0 0.0
    %1677 = vmatpush.msra.mxu0 0.0
    %1678 = vmatpush.msra.mxu0 0.0
    %1679 = vmatpush.msra.mxu0 0.0
    %1680 = vmatpush.msra.mxu0 0.0
    %1681 = vmatpush.msra.mxu0 %v1665
    %1682 = vmatpush.msra.mxu0 %v1661
    %1683 = vmatpush.msra.mxu0 %v1657
    %1684 = vmatpush.msra.mxu0 %v1653
    %1685 = vmatmul.f32.gmra.mxu0 %v242
    %v1686 = vpop.f32.mrf.mxu0
    %v1687 = vadd.f32 %v238, %v1686
    %1688 = vdwg.mxu0
    %1689 = vmatpush.msra.mxu0 0.0
    %1690 = vmatpush.msra.mxu0 0.0
    %1691 = vmatpush.msra.mxu0 0.0
    %1692 = vmatpush.msra.mxu0 0.0
    %1693 = vmatpush.msra.mxu0 0.0
    %1694 = vmatpush.msra.mxu0 0.0
    %1695 = vmatpush.msra.mxu0 0.0
    %1696 = vmatpush.msra.mxu0 0.0
    %1697 = vmatpush.msra.mxu0 0.0
    %1698 = vmatpush.msra.mxu0 0.0
    %1699 = vmatpush.msra.mxu0 0.0
    %1700 = vmatpush.msra.mxu0 0.0
    %1701 = vmatpush.msra.mxu0 %v1666
    %1702 = vmatpush.msra.mxu0 %v1662
    %1703 = vmatpush.msra.mxu0 %v1658
    %1704 = vmatpush.msra.mxu0 %v1654
    %1705 = vmatmul.f32.gmra.mxu0 %v242
    %v1706 = vpop.f32.mrf.mxu0
    %v1707 = vadd.f32 %v238, %v1706
    %1708 = vdwg.mxu0
    %1709 = vmatpush.msra.mxu0 0.0
    %1710 = vmatpush.msra.mxu0 0.0
    %1711 = vmatpush.msra.mxu0 0.0
    %1712 = vmatpush.msra.mxu0 0.0
    %1713 = vmatpush.msra.mxu0 0.0
    %1714 = vmatpush.msra.mxu0 0.0
    %1715 = vmatpush.msra.mxu0 0.0
    %1716 = vmatpush.msra.mxu0 0.0
    %1717 = vmatpush.msra.mxu0 0.0
    %1718 = vmatpush.msra.mxu0 0.0
    %1719 = vmatpush.msra.mxu0 0.0
    %1720 = vmatpush.msra.mxu0 0.0
    %1721 = vmatpush.msra.mxu0 %v1667
    %1722 = vmatpush.msra.mxu0 %v1663
    %1723 = vmatpush.msra.mxu0 %v1659
    %1724 = vmatpush.msra.mxu0 %v1655
    %1725 = vmatmul.f32.gmra.mxu0 %v242
    %v1726 = vpop.f32.mrf.mxu0
    %v1727 = vadd.f32 %v238, %v1726
    %1728 = vdwg.mxu0
    %1729 = vmatpush.msra.mxu0 0.0
    %1730 = vmatpush.msra.mxu0 0.0
    %1731 = vmatpush.msra.mxu0 0.0
    %1732 = vmatpush.msra.mxu0 0.0
    %1733 = vmatpush.msra.mxu0 0.0
    %1734 = vmatpush.msra.mxu0 0.0
    %1735 = vmatpush.msra.mxu0 0.0
    %1736 = vmatpush.msra.mxu0 0.0
    %1737 = vmatpush.msra.mxu0 0.0
    %1738 = vmatpush.msra.mxu0 0.0
    %1739 = vmatpush.msra.mxu0 0.0
    %1740 = vmatpush.msra.mxu0 0.0
    %1741 = vmatpush.msra.mxu0 %v1668
    %1742 = vmatpush.msra.mxu0 %v1664
    %1743 = vmatpush.msra.mxu0 %v1660
    %1744 = vmatpush.msra.mxu0 %v1656
    %1745 = vmatmul.f32.gmra.mxu0 %v242
    %v1746 = vpop.f32.mrf.mxu0
    %v1747 = vadd.f32 %v238, %v1746
    %1748 = vdwg.mxu0
    %s1749 = sld [smem:[#allocation2 + $0x100]]
    %s1750 = sld [smem:[#allocation2 + $0x101]]
    %s1751 = sld [smem:[#allocation2 + $0x102]]
    %v1752 = vstv %s1749
    %v1753 = vmul.f32 %v1752, %v1493
    %v1754 = vmul.f32 %v1752, %v1494
    %v1755 = vstv %s1750
    %v1756 = vmul.f32 %v1755, %v1687
    %v1757 = vmul.f32 %v1755, %v1707
    %v1758 = vmul.f32 %v1755, %v1727
    %v1759 = vmul.f32 %v1755, %v1747
    %v1764 = vrot.slane %v1757, 4
    %v1765 = vrot.slane %v1759, 4
    %v1766 = vsel %vm94, %v1756, %v1764
    %v1767 = vsel %vm94, %v1758, %v1765
    %v1770 = vsub.f32 %v1753, %v1766
    %v1771 = vsub.f32 %v1754, %v1767
    %s1772 = scalar_lea.vmem %s2, 32
    %v1773 = vld [vmem:[%s1772] sm:$0xff]
    %v1774 = vld [vmem:[%s1772 + $0x8] sm:$0xff]
    %v1775 = vstv %s1751
    %v1776 = vmul.f32 %v1775, %v1773
    %v1777 = vmul.f32 %v1775, %v1774
    %v1778 = vadd.f32 %v1770, %v1776
    %v1779 = vadd.f32 %v1771, %v1777
    %s1780 = scalar_lea.vmem %s4, 32
    %v1781 = vld [vmem:[%s1780] sm:$0xff]
    %v1782 = vld [vmem:[%s1780 + $0x8] sm:$0xff]
    %v1783 = vld [vmem:[%s1780 + $0x10] sm:$0xff]
    %v1784 = vld [vmem:[%s1780 + $0x18] sm:$0xff]
    %1786 = vset.pattern.permute.xlu0 0
    %1787 = vperm.xlu0 %1786, %v1781
    %v1788 = vpop.permute.xlu0 %1787
    %1791 = vset.pattern.permute.xlu0 0
    %1792 = vperm.xlu0 %1791, %v1782
    %v1793 = vpop.permute.xlu0 %1792
    %1796 = vset.pattern.permute.xlu0 0
    %1797 = vperm.xlu0 %1796, %v1783
    %v1798 = vpop.permute.xlu0 %1797
    %1801 = vset.pattern.permute.xlu0 0
    %1802 = vperm.xlu0 %1801, %v1784
    %v1803 = vpop.permute.xlu0 %1802
    %1807 = vst [vmem:[#allocation1] ss:$2 sm:$0xff] %v1778
    %s1808 = scalar_lea.vmem [#allocation1], 16
    %1809 = vst [vmem:[%s1808] ss:$2 sm:$0xff] %v1779
    %v1810 = vld.sshfl [vmem:[#allocation1] sm:$0xff pattern:$0x75316420]
    %v1811 = vld.sshfl [vmem:[#allocation1 + $0x8] sm:$0xff pattern:$0x75316420]
    %v1812 = vld.sshfl [vmem:[#allocation1 + $0x10] sm:$0xff pattern:$0x75316420]
    %v1813 = vld.sshfl [vmem:[#allocation1 + $0x18] sm:$0xff pattern:$0x75316420]
    %v1814 = vsel %vm94, %v1810, 0
    %v1816 = vsel %vm94, %v1811, 0
    %v1818 = vsel %vm94, %v1812, 0
    %v1820 = vsel %vm94, %v1813, 0
    %1822 = vmatpush.msra.mxu0 0.0
    %1823 = vmatpush.msra.mxu0 0.0
    %1824 = vmatpush.msra.mxu0 0.0
    %1825 = vmatpush.msra.mxu0 0.0
    %1826 = vmatpush.msra.mxu0 0.0
    %1827 = vmatpush.msra.mxu0 0.0
    %1828 = vmatpush.msra.mxu0 0.0
    %1829 = vmatpush.msra.mxu0 0.0
    %1830 = vmatpush.msra.mxu0 0.0
    %1831 = vmatpush.msra.mxu0 0.0
    %1832 = vmatpush.msra.mxu0 0.0
    %1833 = vmatpush.msra.mxu0 0.0
    %1834 = vmatpush.msra.mxu0 0.0
    %1835 = vmatpush.msra.mxu0 0.0
    %1836 = vmatpush.msra.mxu0 0.0
    %1837 = vmatpush.msra.mxu0 %v1814
    %1838 = vmatmul.f32.gmra.mxu0 %v83
    %v1839 = vpop.f32.mrf.mxu0
    %v1840 = vadd.f32 %v1788, %v1839
    %1841 = vmatmul.f32.gmra.mxu0 %v86
    %v1842 = vpop.f32.mrf.mxu0
    %v1843 = vadd.f32 %v1793, %v1842
    %1844 = vmatmul.f32.gmra.mxu0 %v89
    %v1845 = vpop.f32.mrf.mxu0
    %v1846 = vadd.f32 %v1798, %v1845
    %1847 = vmatmul.f32.gmra.mxu0 %v92
    %v1848 = vpop.f32.mrf.mxu0
    %v1849 = vadd.f32 %v1803, %v1848
    %1850 = vdwg.mxu0
    %1851 = vmatpush.msra.mxu0 0.0
    %1852 = vmatpush.msra.mxu0 0.0
    %1853 = vmatpush.msra.mxu0 0.0
    %1854 = vmatpush.msra.mxu0 0.0
    %1855 = vmatpush.msra.mxu0 0.0
    %1856 = vmatpush.msra.mxu0 0.0
    %1857 = vmatpush.msra.mxu0 0.0
    %1858 = vmatpush.msra.mxu0 0.0
    %1859 = vmatpush.msra.mxu0 0.0
    %1860 = vmatpush.msra.mxu0 0.0
    %1861 = vmatpush.msra.mxu0 0.0
    %1862 = vmatpush.msra.mxu0 0.0
    %1863 = vmatpush.msra.mxu0 0.0
    %1864 = vmatpush.msra.mxu0 0.0
    %1865 = vmatpush.msra.mxu0 0.0
    %1866 = vmatpush.msra.mxu0 %v1816
    %1867 = vmatmul.f32.gmra.mxu0 %v83
    %v1868 = vpop.f32.mrf.mxu0
    %v1869 = vadd.f32 %v1788, %v1868
    %1870 = vmatmul.f32.gmra.mxu0 %v86
    %v1871 = vpop.f32.mrf.mxu0
    %v1872 = vadd.f32 %v1793, %v1871
    %1873 = vmatmul.f32.gmra.mxu0 %v89
    %v1874 = vpop.f32.mrf.mxu0
    %v1875 = vadd.f32 %v1798, %v1874
    %1876 = vmatmul.f32.gmra.mxu0 %v92
    %v1877 = vpop.f32.mrf.mxu0
    %v1878 = vadd.f32 %v1803, %v1877
    %1879 = vdwg.mxu0
    %1880 = vmatpush.msra.mxu0 0.0
    %1881 = vmatpush.msra.mxu0 0.0
    %1882 = vmatpush.msra.mxu0 0.0
    %1883 = vmatpush.msra.mxu0 0.0
    %1884 = vmatpush.msra.mxu0 0.0
    %1885 = vmatpush.msra.mxu0 0.0
    %1886 = vmatpush.msra.mxu0 0.0
    %1887 = vmatpush.msra.mxu0 0.0
    %1888 = vmatpush.msra.mxu0 0.0
    %1889 = vmatpush.msra.mxu0 0.0
    %1890 = vmatpush.msra.mxu0 0.0
    %1891 = vmatpush.msra.mxu0 0.0
    %1892 = vmatpush.msra.mxu0 0.0
    %1893 = vmatpush.msra.mxu0 0.0
    %1894 = vmatpush.msra.mxu0 0.0
    %1895 = vmatpush.msra.mxu0 %v1818
    %1896 = vmatmul.f32.gmra.mxu0 %v83
    %v1897 = vpop.f32.mrf.mxu0
    %v1898 = vadd.f32 %v1788, %v1897
    %1899 = vmatmul.f32.gmra.mxu0 %v86
    %v1900 = vpop.f32.mrf.mxu0
    %v1901 = vadd.f32 %v1793, %v1900
    %1902 = vmatmul.f32.gmra.mxu0 %v89
    %v1903 = vpop.f32.mrf.mxu0
    %v1904 = vadd.f32 %v1798, %v1903
    %1905 = vmatmul.f32.gmra.mxu0 %v92
    %v1906 = vpop.f32.mrf.mxu0
    %v1907 = vadd.f32 %v1803, %v1906
    %1908 = vdwg.mxu0
    %1909 = vmatpush.msra.mxu0 0.0
    %1910 = vmatpush.msra.mxu0 0.0
    %1911 = vmatpush.msra.mxu0 0.0
    %1912 = vmatpush.msra.mxu0 0.0
    %1913 = vmatpush.msra.mxu0 0.0
    %1914 = vmatpush.msra.mxu0 0.0
    %1915 = vmatpush.msra.mxu0 0.0
    %1916 = vmatpush.msra.mxu0 0.0
    %1917 = vmatpush.msra.mxu0 0.0
    %1918 = vmatpush.msra.mxu0 0.0
    %1919 = vmatpush.msra.mxu0 0.0
    %1920 = vmatpush.msra.mxu0 0.0
    %1921 = vmatpush.msra.mxu0 0.0
    %1922 = vmatpush.msra.mxu0 0.0
    %1923 = vmatpush.msra.mxu0 0.0
    %1924 = vmatpush.msra.mxu0 %v1820
    %1925 = vmatmul.f32.gmra.mxu0 %v83
    %v1926 = vpop.f32.mrf.mxu0
    %v1927 = vadd.f32 %v1788, %v1926
    %1928 = vmatmul.f32.gmra.mxu0 %v86
    %v1929 = vpop.f32.mrf.mxu0
    %v1930 = vadd.f32 %v1793, %v1929
    %1931 = vmatmul.f32.gmra.mxu0 %v89
    %v1932 = vpop.f32.mrf.mxu0
    %v1933 = vadd.f32 %v1798, %v1932
    %1934 = vmatmul.f32.gmra.mxu0 %v92
    %v1935 = vpop.f32.mrf.mxu0
    %v1936 = vadd.f32 %v1803, %v1935
    %1937 = vdwg.mxu0
    %v1938 = vtanh.pop %v1840
    %v1939 = vtanh.pop %v1869
    %v1940 = vtanh.pop %v1898
    %v1941 = vtanh.pop %v1927
    %v1942 = vtanh.pop %v1843
    %v1943 = vtanh.pop %v1872
    %v1944 = vtanh.pop %v1901
    %v1945 = vtanh.pop %v1930
    %v1946 = vtanh.pop %v1846
    %v1947 = vtanh.pop %v1875
    %v1948 = vtanh.pop %v1904
    %v1949 = vtanh.pop %v1933
    %v1950 = vtanh.pop %v1849
    %v1951 = vtanh.pop %v1878
    %v1952 = vtanh.pop %v1907
    %v1953 = vtanh.pop %v1936
    %1954 = vmatpush.msra.mxu0 0.0
    %1955 = vmatpush.msra.mxu0 0.0
    %1956 = vmatpush.msra.mxu0 0.0
    %1957 = vmatpush.msra.mxu0 0.0
    %1958 = vmatpush.msra.mxu0 0.0
    %1959 = vmatpush.msra.mxu0 0.0
    %1960 = vmatpush.msra.mxu0 0.0
    %1961 = vmatpush.msra.mxu0 0.0
    %1962 = vmatpush.msra.mxu0 0.0
    %1963 = vmatpush.msra.mxu0 0.0
    %1964 = vmatpush.msra.mxu0 0.0
    %1965 = vmatpush.msra.mxu0 0.0
    %1966 = vmatpush.msra.mxu0 %v1950
    %1967 = vmatpush.msra.mxu0 %v1946
    %1968 = vmatpush.msra.mxu0 %v1942
    %1969 = vmatpush.msra.mxu0 %v1938
    %1970 = vmatmul.f32.gmra.mxu0 %v242
    %v1971 = vpop.f32.mrf.mxu0
    %v1972 = vadd.f32 %v238, %v1971
    %1973 = vdwg.mxu0
    %1974 = vmatpush.msra.mxu0 0.0
    %1975 = vmatpush.msra.mxu0 0.0
    %1976 = vmatpush.msra.mxu0 0.0
    %1977 = vmatpush.msra.mxu0 0.0
    %1978 = vmatpush.msra.mxu0 0.0
    %1979 = vmatpush.msra.mxu0 0.0
    %1980 = vmatpush.msra.mxu0 0.0
    %1981 = vmatpush.msra.mxu0 0.0
    %1982 = vmatpush.msra.mxu0 0.0
    %1983 = vmatpush.msra.mxu0 0.0
    %1984 = vmatpush.msra.mxu0 0.0
    %1985 = vmatpush.msra.mxu0 0.0
    %1986 = vmatpush.msra.mxu0 %v1951
    %1987 = vmatpush.msra.mxu0 %v1947
    %1988 = vmatpush.msra.mxu0 %v1943
    %1989 = vmatpush.msra.mxu0 %v1939
    %1990 = vmatmul.f32.gmra.mxu0 %v242
    %v1991 = vpop.f32.mrf.mxu0
    %v1992 = vadd.f32 %v238, %v1991
    %1993 = vdwg.mxu0
    %1994 = vmatpush.msra.mxu0 0.0
    %1995 = vmatpush.msra.mxu0 0.0
    %1996 = vmatpush.msra.mxu0 0.0
    %1997 = vmatpush.msra.mxu0 0.0
    %1998 = vmatpush.msra.mxu0 0.0
    %1999 = vmatpush.msra.mxu0 0.0
    %2000 = vmatpush.msra.mxu0 0.0
    %2001 = vmatpush.msra.mxu0 0.0
    %2002 = vmatpush.msra.mxu0 0.0
    %2003 = vmatpush.msra.mxu0 0.0
    %2004 = vmatpush.msra.mxu0 0.0
    %2005 = vmatpush.msra.mxu0 0.0
    %2006 = vmatpush.msra.mxu0 %v1952
    %2007 = vmatpush.msra.mxu0 %v1948
    %2008 = vmatpush.msra.mxu0 %v1944
    %2009 = vmatpush.msra.mxu0 %v1940
    %2010 = vmatmul.f32.gmra.mxu0 %v242
    %v2011 = vpop.f32.mrf.mxu0
    %v2012 = vadd.f32 %v238, %v2011
    %2013 = vdwg.mxu0
    %2014 = vmatpush.msra.mxu0 0.0
    %2015 = vmatpush.msra.mxu0 0.0
    %2016 = vmatpush.msra.mxu0 0.0
    %2017 = vmatpush.msra.mxu0 0.0
    %2018 = vmatpush.msra.mxu0 0.0
    %2019 = vmatpush.msra.mxu0 0.0
    %2020 = vmatpush.msra.mxu0 0.0
    %2021 = vmatpush.msra.mxu0 0.0
    %2022 = vmatpush.msra.mxu0 0.0
    %2023 = vmatpush.msra.mxu0 0.0
    %2024 = vmatpush.msra.mxu0 0.0
    %2025 = vmatpush.msra.mxu0 0.0
    %2026 = vmatpush.msra.mxu0 %v1953
    %2027 = vmatpush.msra.mxu0 %v1949
    %2028 = vmatpush.msra.mxu0 %v1945
    %2029 = vmatpush.msra.mxu0 %v1941
    %2030 = vmatmul.f32.gmra.mxu0 %v242
    %v2031 = vpop.f32.mrf.mxu0
    %v2032 = vadd.f32 %v238, %v2031
    %2033 = vdwg.mxu0
    %s2034 = sld [smem:[#allocation2 + $0x80]]
    %s2035 = sld [smem:[#allocation2 + $0x81]]
    %s2036 = sld [smem:[#allocation2 + $0x82]]
    %v2037 = vstv %s2034
    %v2038 = vmul.f32 %v2037, %v1778
    %v2039 = vmul.f32 %v2037, %v1779
    %v2040 = vstv %s2035
    %v2041 = vmul.f32 %v2040, %v1972
    %v2042 = vmul.f32 %v2040, %v1992
    %v2043 = vmul.f32 %v2040, %v2012
    %v2044 = vmul.f32 %v2040, %v2032
    %v2049 = vrot.slane %v2042, 4
    %v2050 = vrot.slane %v2044, 4
    %v2051 = vsel %vm94, %v2041, %v2049
    %v2052 = vsel %vm94, %v2043, %v2050
    %v2055 = vsub.f32 %v2038, %v2051
    %v2056 = vsub.f32 %v2039, %v2052
    %s2057 = scalar_lea.vmem %s2, 16
    %v2058 = vld [vmem:[%s2057] sm:$0xff]
    %v2059 = vld [vmem:[%s2057 + $0x8] sm:$0xff]
    %v2060 = vstv %s2036
    %v2061 = vmul.f32 %v2060, %v2058
    %v2062 = vmul.f32 %v2060, %v2059
    %v2063 = vadd.f32 %v2055, %v2061
    %v2064 = vadd.f32 %v2056, %v2062
    %v2065 = vld [vmem:[%s4] sm:$0xff]
    %v2066 = vld [vmem:[%s4 + $0x8] sm:$0xff]
    %v2067 = vld [vmem:[%s4 + $0x10] sm:$0xff]
    %v2068 = vld [vmem:[%s4 + $0x18] sm:$0xff]
    %2070 = vset.pattern.permute.xlu0 0
    %2071 = vperm.xlu0 %2070, %v2065
    %v2072 = vpop.permute.xlu0 %2071
    %2075 = vset.pattern.permute.xlu0 0
    %2076 = vperm.xlu0 %2075, %v2066
    %v2077 = vpop.permute.xlu0 %2076
    %2080 = vset.pattern.permute.xlu0 0
    %2081 = vperm.xlu0 %2080, %v2067
    %v2082 = vpop.permute.xlu0 %2081
    %2085 = vset.pattern.permute.xlu0 0
    %2086 = vperm.xlu0 %2085, %v2068
    %v2087 = vpop.permute.xlu0 %2086
    %2091 = vst [vmem:[#allocation1] ss:$2 sm:$0xff] %v2063
    %s2092 = scalar_lea.vmem [#allocation1], 16
    %2093 = vst [vmem:[%s2092] ss:$2 sm:$0xff] %v2064
    %v2094 = vld.sshfl [vmem:[#allocation1] sm:$0xff pattern:$0x75316420]
    %v2095 = vld.sshfl [vmem:[#allocation1 + $0x8] sm:$0xff pattern:$0x75316420]
    %v2096 = vld.sshfl [vmem:[#allocation1 + $0x10] sm:$0xff pattern:$0x75316420]
    %v2097 = vld.sshfl [vmem:[#allocation1 + $0x18] sm:$0xff pattern:$0x75316420]
    %v2098 = vsel %vm94, %v2094, 0
    %v2100 = vsel %vm94, %v2095, 0
    %v2102 = vsel %vm94, %v2096, 0
    %v2104 = vsel %vm94, %v2097, 0
    %2106 = vmatpush.msra.mxu0 0.0
    %2107 = vmatpush.msra.mxu0 0.0
    %2108 = vmatpush.msra.mxu0 0.0
    %2109 = vmatpush.msra.mxu0 0.0
    %2110 = vmatpush.msra.mxu0 0.0
    %2111 = vmatpush.msra.mxu0 0.0
    %2112 = vmatpush.msra.mxu0 0.0
    %2113 = vmatpush.msra.mxu0 0.0
    %2114 = vmatpush.msra.mxu0 0.0
    %2115 = vmatpush.msra.mxu0 0.0
    %2116 = vmatpush.msra.mxu0 0.0
    %2117 = vmatpush.msra.mxu0 0.0
    %2118 = vmatpush.msra.mxu0 0.0
    %2119 = vmatpush.msra.mxu0 0.0
    %2120 = vmatpush.msra.mxu0 0.0
    %2121 = vmatpush.msra.mxu0 %v2098
    %2122 = vmatmul.f32.gmra.mxu0 %v83
    %v2123 = vpop.f32.mrf.mxu0
    %v2124 = vadd.f32 %v2072, %v2123
    %2125 = vmatmul.f32.gmra.mxu0 %v86
    %v2126 = vpop.f32.mrf.mxu0
    %v2127 = vadd.f32 %v2077, %v2126
    %2128 = vmatmul.f32.gmra.mxu0 %v89
    %v2129 = vpop.f32.mrf.mxu0
    %v2130 = vadd.f32 %v2082, %v2129
    %2131 = vmatmul.f32.gmra.mxu0 %v92
    %v2132 = vpop.f32.mrf.mxu0
    %v2133 = vadd.f32 %v2087, %v2132
    %2134 = vdwg.mxu0
    %2135 = vmatpush.msra.mxu0 0.0
    %2136 = vmatpush.msra.mxu0 0.0
    %2137 = vmatpush.msra.mxu0 0.0
    %2138 = vmatpush.msra.mxu0 0.0
    %2139 = vmatpush.msra.mxu0 0.0
    %2140 = vmatpush.msra.mxu0 0.0
    %2141 = vmatpush.msra.mxu0 0.0
    %2142 = vmatpush.msra.mxu0 0.0
    %2143 = vmatpush.msra.mxu0 0.0
    %2144 = vmatpush.msra.mxu0 0.0
    %2145 = vmatpush.msra.mxu0 0.0
    %2146 = vmatpush.msra.mxu0 0.0
    %2147 = vmatpush.msra.mxu0 0.0
    %2148 = vmatpush.msra.mxu0 0.0
    %2149 = vmatpush.msra.mxu0 0.0
    %2150 = vmatpush.msra.mxu0 %v2100
    %2151 = vmatmul.f32.gmra.mxu0 %v83
    %v2152 = vpop.f32.mrf.mxu0
    %v2153 = vadd.f32 %v2072, %v2152
    %2154 = vmatmul.f32.gmra.mxu0 %v86
    %v2155 = vpop.f32.mrf.mxu0
    %v2156 = vadd.f32 %v2077, %v2155
    %2157 = vmatmul.f32.gmra.mxu0 %v89
    %v2158 = vpop.f32.mrf.mxu0
    %v2159 = vadd.f32 %v2082, %v2158
    %2160 = vmatmul.f32.gmra.mxu0 %v92
    %v2161 = vpop.f32.mrf.mxu0
    %v2162 = vadd.f32 %v2087, %v2161
    %2163 = vdwg.mxu0
    %2164 = vmatpush.msra.mxu0 0.0
    %2165 = vmatpush.msra.mxu0 0.0
    %2166 = vmatpush.msra.mxu0 0.0
    %2167 = vmatpush.msra.mxu0 0.0
    %2168 = vmatpush.msra.mxu0 0.0
    %2169 = vmatpush.msra.mxu0 0.0
    %2170 = vmatpush.msra.mxu0 0.0
    %2171 = vmatpush.msra.mxu0 0.0
    %2172 = vmatpush.msra.mxu0 0.0
    %2173 = vmatpush.msra.mxu0 0.0
    %2174 = vmatpush.msra.mxu0 0.0
    %2175 = vmatpush.msra.mxu0 0.0
    %2176 = vmatpush.msra.mxu0 0.0
    %2177 = vmatpush.msra.mxu0 0.0
    %2178 = vmatpush.msra.mxu0 0.0
    %2179 = vmatpush.msra.mxu0 %v2102
    %2180 = vmatmul.f32.gmra.mxu0 %v83
    %v2181 = vpop.f32.mrf.mxu0
    %v2182 = vadd.f32 %v2072, %v2181
    %2183 = vmatmul.f32.gmra.mxu0 %v86
    %v2184 = vpop.f32.mrf.mxu0
    %v2185 = vadd.f32 %v2077, %v2184
    %2186 = vmatmul.f32.gmra.mxu0 %v89
    %v2187 = vpop.f32.mrf.mxu0
    %v2188 = vadd.f32 %v2082, %v2187
    %2189 = vmatmul.f32.gmra.mxu0 %v92
    %v2190 = vpop.f32.mrf.mxu0
    %v2191 = vadd.f32 %v2087, %v2190
    %2192 = vdwg.mxu0
    %2193 = vmatpush.msra.mxu0 0.0
    %2194 = vmatpush.msra.mxu0 0.0
    %2195 = vmatpush.msra.mxu0 0.0
    %2196 = vmatpush.msra.mxu0 0.0
    %2197 = vmatpush.msra.mxu0 0.0
    %2198 = vmatpush.msra.mxu0 0.0
    %2199 = vmatpush.msra.mxu0 0.0
    %2200 = vmatpush.msra.mxu0 0.0
    %2201 = vmatpush.msra.mxu0 0.0
    %2202 = vmatpush.msra.mxu0 0.0
    %2203 = vmatpush.msra.mxu0 0.0
    %2204 = vmatpush.msra.mxu0 0.0
    %2205 = vmatpush.msra.mxu0 0.0
    %2206 = vmatpush.msra.mxu0 0.0
    %2207 = vmatpush.msra.mxu0 0.0
    %2208 = vmatpush.msra.mxu0 %v2104
    %2209 = vmatmul.f32.gmra.mxu0 %v83
    %v2210 = vpop.f32.mrf.mxu0
    %v2211 = vadd.f32 %v2072, %v2210
    %2212 = vmatmul.f32.gmra.mxu0 %v86
    %v2213 = vpop.f32.mrf.mxu0
    %v2214 = vadd.f32 %v2077, %v2213
    %2215 = vmatmul.f32.gmra.mxu0 %v89
    %v2216 = vpop.f32.mrf.mxu0
    %v2217 = vadd.f32 %v2082, %v2216
    %2218 = vmatmul.f32.gmra.mxu0 %v92
    %v2219 = vpop.f32.mrf.mxu0
    %v2220 = vadd.f32 %v2087, %v2219
    %2221 = vdwg.mxu0
    %v2222 = vtanh.pop %v2124
    %v2223 = vtanh.pop %v2153
    %v2224 = vtanh.pop %v2182
    %v2225 = vtanh.pop %v2211
    %v2226 = vtanh.pop %v2127
    %v2227 = vtanh.pop %v2156
    %v2228 = vtanh.pop %v2185
    %v2229 = vtanh.pop %v2214
    %v2230 = vtanh.pop %v2130
    %v2231 = vtanh.pop %v2159
    %v2232 = vtanh.pop %v2188
    %v2233 = vtanh.pop %v2217
    %v2234 = vtanh.pop %v2133
    %v2235 = vtanh.pop %v2162
    %v2236 = vtanh.pop %v2191
    %v2237 = vtanh.pop %v2220
    %2238 = vmatpush.msra.mxu0 0.0
    %2239 = vmatpush.msra.mxu0 0.0
    %2240 = vmatpush.msra.mxu0 0.0
    %2241 = vmatpush.msra.mxu0 0.0
    %2242 = vmatpush.msra.mxu0 0.0
    %2243 = vmatpush.msra.mxu0 0.0
    %2244 = vmatpush.msra.mxu0 0.0
    %2245 = vmatpush.msra.mxu0 0.0
    %2246 = vmatpush.msra.mxu0 0.0
    %2247 = vmatpush.msra.mxu0 0.0
    %2248 = vmatpush.msra.mxu0 0.0
    %2249 = vmatpush.msra.mxu0 0.0
    %2250 = vmatpush.msra.mxu0 %v2234
    %2251 = vmatpush.msra.mxu0 %v2230
    %2252 = vmatpush.msra.mxu0 %v2226
    %2253 = vmatpush.msra.mxu0 %v2222
    %2254 = vmatmul.f32.gmra.mxu0 %v242
    %v2255 = vpop.f32.mrf.mxu0
    %v2256 = vadd.f32 %v238, %v2255
    %2257 = vdwg.mxu0
    %2258 = vmatpush.msra.mxu0 0.0
    %2259 = vmatpush.msra.mxu0 0.0
    %2260 = vmatpush.msra.mxu0 0.0
    %2261 = vmatpush.msra.mxu0 0.0
    %2262 = vmatpush.msra.mxu0 0.0
    %2263 = vmatpush.msra.mxu0 0.0
    %2264 = vmatpush.msra.mxu0 0.0
    %2265 = vmatpush.msra.mxu0 0.0
    %2266 = vmatpush.msra.mxu0 0.0
    %2267 = vmatpush.msra.mxu0 0.0
    %2268 = vmatpush.msra.mxu0 0.0
    %2269 = vmatpush.msra.mxu0 0.0
    %2270 = vmatpush.msra.mxu0 %v2235
    %2271 = vmatpush.msra.mxu0 %v2231
    %2272 = vmatpush.msra.mxu0 %v2227
    %2273 = vmatpush.msra.mxu0 %v2223
    %2274 = vmatmul.f32.gmra.mxu0 %v242
    %v2275 = vpop.f32.mrf.mxu0
    %v2276 = vadd.f32 %v238, %v2275
    %2277 = vdwg.mxu0
    %2278 = vmatpush.msra.mxu0 0.0
    %2279 = vmatpush.msra.mxu0 0.0
    %2280 = vmatpush.msra.mxu0 0.0
    %2281 = vmatpush.msra.mxu0 0.0
    %2282 = vmatpush.msra.mxu0 0.0
    %2283 = vmatpush.msra.mxu0 0.0
    %2284 = vmatpush.msra.mxu0 0.0
    %2285 = vmatpush.msra.mxu0 0.0
    %2286 = vmatpush.msra.mxu0 0.0
    %2287 = vmatpush.msra.mxu0 0.0
    %2288 = vmatpush.msra.mxu0 0.0
    %2289 = vmatpush.msra.mxu0 0.0
    %2290 = vmatpush.msra.mxu0 %v2236
    %2291 = vmatpush.msra.mxu0 %v2232
    %2292 = vmatpush.msra.mxu0 %v2228
    %2293 = vmatpush.msra.mxu0 %v2224
    %2294 = vmatmul.f32.gmra.mxu0 %v242
    %v2295 = vpop.f32.mrf.mxu0
    %v2296 = vadd.f32 %v238, %v2295
    %2297 = vdwg.mxu0
    %2298 = vmatpush.msra.mxu0 0.0
    %2299 = vmatpush.msra.mxu0 0.0
    %2300 = vmatpush.msra.mxu0 0.0
    %2301 = vmatpush.msra.mxu0 0.0
    %2302 = vmatpush.msra.mxu0 0.0
    %2303 = vmatpush.msra.mxu0 0.0
    %2304 = vmatpush.msra.mxu0 0.0
    %2305 = vmatpush.msra.mxu0 0.0
    %2306 = vmatpush.msra.mxu0 0.0
    %2307 = vmatpush.msra.mxu0 0.0
    %2308 = vmatpush.msra.mxu0 0.0
    %2309 = vmatpush.msra.mxu0 0.0
    %2310 = vmatpush.msra.mxu0 %v2237
    %2311 = vmatpush.msra.mxu0 %v2233
    %2312 = vmatpush.msra.mxu0 %v2229
    %2313 = vmatpush.msra.mxu0 %v2225
    %2314 = vmatmul.f32.gmra.mxu0 %v242
    %v2315 = vpop.f32.mrf.mxu0
    %v2316 = vadd.f32 %v238, %v2315
    %2317 = vdwg.mxu0
    %s2318 = sld [smem:[#allocation2]]
    %s2319 = sld [smem:[#allocation2 + $0x1]]
    %s2320 = sld [smem:[#allocation2 + $0x2]]
    %v2321 = vstv %s2318
    %v2322 = vmul.f32 %v2321, %v2063
    %v2323 = vmul.f32 %v2321, %v2064
    %v2324 = vstv %s2319
    %v2325 = vmul.f32 %v2324, %v2256
    %v2326 = vmul.f32 %v2324, %v2276
    %v2327 = vmul.f32 %v2324, %v2296
    %v2328 = vmul.f32 %v2324, %v2316
    %v2333 = vrot.slane %v2326, 4
    %v2334 = vrot.slane %v2328, 4
    %v2335 = vsel %vm94, %v2325, %v2333
    %v2336 = vsel %vm94, %v2327, %v2334
    %v2339 = vsub.f32 %v2322, %v2335
    %v2340 = vsub.f32 %v2323, %v2336
    %v2341 = vld [vmem:[%s2] sm:$0xff]
    %v2342 = vld [vmem:[%s2 + $0x8] sm:$0xff]
    %v2343 = vstv %s2320
    %v2344 = vmul.f32 %v2343, %v2341
    %v2345 = vmul.f32 %v2343, %v2342
    %v2346 = vadd.f32 %v2339, %v2344
    %v2347 = vadd.f32 %v2340, %v2345
    %v2348 = vmax.f32 %v2346, -1.0
    %v2349 = vmax.f32 %v2347, -1.0
    %v2350 = vmin.f32 %v2348, 1.0
    %v2351 = vmin.f32 %v2349, 1.0
    %v2352 = vmul.f32 %v2350, 0.5
    %v2353 = vmul.f32 %v2351, 0.5
    %v2354 = vadd.f32 %v2352, 0.5
    %v2355 = vadd.f32 %v2353, 0.5
    %2356 = vst [vmem:[%s7] sm:$0xff] %v2354
    %2357 = vst [vmem:[%s7 + $0x8] sm:$0xff] %v2355
    // Predicated region
    $region34: #{_lambda_.1} parent=1 // pred_check
      _
    $region35: #{_lambda_.1} parent=1 // pred_check_branch
      %2359 = sbr.rel (0) target = $region37
    $region36: #{_lambda_.1} parent=1 // pred_region
      _
    $region37: #{_lambda_.1} parent=1 // pred_fallthru
      _
    // Predicated region
    $region38: #{_lambda_.1} parent=1 // pred_check
      _
    $region39: #{_lambda_.1} parent=1 // pred_check_branch
      %2361 = sbr.rel (0) target = $region41
    $region40: #{_lambda_.1} parent=1 // pred_region
      _
    $region41: #{_lambda_.1} parent=1 // pred_fallthru
      _
    %2362 = vsyncpa [#allocation3], 1

</llo_original>
